<compile_context>
chip_gen: v5e
topology: v5e:2x2
jax: 0.10.0
libtpu: 0.0.40
codegen_flags: <defaults>
</compile_context>

<pallas_src>
from functools import partial

import jax
import jax.numpy as jnp
from jax.experimental import pallas as pl
from jax.experimental.pallas import tpu as pltpu


# --------------------------------------------------------------------------
# Generation-aware VMEM budget
# --------------------------------------------------------------------------
try:
    _VMEM_CAP = int(getattr(pltpu.get_tpu_info(), "vmem_capacity_bytes"))
except Exception:  # pragma: no cover - conservative fallback
    _VMEM_CAP = 64 * 1024 * 1024

if _VMEM_CAP >= 120 * 1024 * 1024:        # v5e / v6e (128 MiB VMEM)
    _VMEM_LIMIT = 100 * 1024 * 1024
else:                                     # v7x (64 MiB VMEM) or unknown
    _VMEM_LIMIT = min(42 * 1024 * 1024, (_VMEM_CAP * 2) // 3)

_VMEM_BUDGET = int(_VMEM_LIMIT * 0.8)     # tile-planning budget (headroom)


def _tile(dim, target, align):
    """Largest tile <= target that divides `dim` and is a multiple of `align`
    (TPU (8,128) layout rule), falling back to the full dim."""
    if dim <= target:
        return dim
    t = (target // align) * align
    while t >= align:
        if dim % t == 0:
            return t
        t -= align
    return dim


def _apply_act(y, activation):
    if activation == "gelu":
        # TODO(synk): HF BERT uses exact erf-GELU; tanh approximation kept for
        # guaranteed Mosaic lowering (EUP tanh); numerics differ slightly.
        return jax.nn.gelu(y)
    if activation == "tanh":
        return jnp.tanh(y)
    return y


# --------------------------------------------------------------------------
# Linear kernels (bf16 operands, f32 accumulation, fused epilogues, bf16 out)
# --------------------------------------------------------------------------
def _linear_full_kernel(x_ref, w_ref, b_ref, o_ref, *, activation):
    # Full-K single pass: no accumulator revisit.
    y = jnp.dot(x_ref[...], w_ref[...], preferred_element_type=jnp.float32)
    y = _apply_act(y + b_ref[...], activation)
    o_ref[...] = y.astype(o_ref.dtype)


def _linear_acc_kernel(x_ref, w_ref, b_ref, o_ref, acc_ref, *, activation):
    @pl.when(pl.program_id(2) == 0)
    def _():
        acc_ref[...] = jnp.zeros(acc_ref.shape, acc_ref.dtype)

    acc_ref[...] += jnp.dot(x_ref[...], w_ref[...],
                            preferred_element_type=jnp.float32)

    @pl.when(pl.program_id(2) == pl.num_programs(2) - 1)
    def _():
        y = _apply_act(acc_ref[...] + b_ref[...], activation)
        o_ref[...] = y.astype(o_ref.dtype)


def pallas_linear(x, w, b, *, activation=None, out_dtype=jnp.bfloat16):
    """x: [M, K], w: [K, N], b: [N] -> [M, N] (out_dtype), fused activation."""
    M, K = x.shape
    N = w.shape[1]
    ob = jnp.dtype(out_dtype).itemsize
    xb = x.astype(jnp.bfloat16)
    wb = w.astype(jnp.bfloat16)
    b2 = b.reshape(1, N).astype(jnp.float32)

    def fits_full_k(tm, tn):
        return (2 * 2 * tm * K          # x blocks, double-buffered bf16
                + 2 * 2 * K * tn        # w blocks
                + 2 * ob * tm * tn      # output blocks
                + 2 * 4 * tn) <= _VMEM_BUDGET

    plan = None
    for t in (1024, 512, 256, 128, 64, 32, 16, 8):   # biggest rows, full N
        tm = _tile(M, t, 8)
        if fits_full_k(tm, N):
            plan = (tm, N)
            break
    if plan is None:                                  # shrink N tile, keep full K
        tm = _tile(M, 256, 8)
        for t in (1024, 512, 256, 128):
            tn = _tile(N, t, 128)
            if fits_full_k(tm, tn):
                plan = (tm, tn)
                break

    if plan is not None:
        tm, tn = plan
        return pl.pallas_call(
            partial(_linear_full_kernel, activation=activation),
            grid=(M // tm, N // tn),
            in_specs=[
                pl.BlockSpec((tm, K), lambda i, j: (i, 0)),
                pl.BlockSpec((K, tn), lambda i, j: (0, j)),
                pl.BlockSpec((1, tn), lambda i, j: (0, j)),
            ],
            out_specs=pl.BlockSpec((tm, tn), lambda i, j: (i, j)),
            out_shape=jax.ShapeDtypeStruct((M, N), out_dtype),
            compiler_params=pltpu.CompilerParams(
                dimension_semantics=("parallel", "parallel"),
                vmem_limit_bytes=_VMEM_LIMIT),
        )(xb, wb, b2)

    # Fallback: K-tiled reduction with a resident f32 accumulator.
    tm = _tile(M, 256, 8)
    tn = _tile(N, 512, 128)
    tk = _tile(K, 512, 256)
    if K % tk != 0:
        tk = _tile(K, 512, 128)
    return pl.pallas_call(
        partial(_linear_acc_kernel, activation=activation),
        grid=(M // tm, N // tn, K // tk),
        in_specs=[
            pl.BlockSpec((tm, tk), lambda i, j, k: (i, k)),
            pl.BlockSpec((tk, tn), lambda i, j, k: (k, j)),
            pl.BlockSpec((1, tn), lambda i, j, k: (0, j)),
        ],
        out_specs=pl.BlockSpec((tm, tn), lambda i, j, k: (i, j)),
        out_shape=jax.ShapeDtypeStruct((M, N), out_dtype),
        scratch_shapes=[pltpu.VMEM((tm, tn), jnp.float32)],
        compiler_params=pltpu.CompilerParams(
            dimension_semantics=("parallel", "parallel", "arbitrary"),
            vmem_limit_bytes=_VMEM_LIMIT),
    )(xb, wb, b2)


# --------------------------------------------------------------------------
# Fused matmul + bias + residual + LayerNorm (bf16 in/out, f32 statistics)
# --------------------------------------------------------------------------
def _linear_res_ln_full_kernel(x_ref, w_ref, b_ref, r_ref, g_ref, bt_ref,
                               o_ref, *, eps):
    y = jnp.dot(x_ref[...], w_ref[...], preferred_element_type=jnp.float32)
    y = y + b_ref[...] + r_ref[...].astype(jnp.float32)
    mu = jnp.mean(y, axis=-1, keepdims=True)
    var = jnp.mean(jnp.square(y - mu), axis=-1, keepdims=True)
    o_ref[...] = ((y - mu) * jax.lax.rsqrt(var + eps) * g_ref[...]
                  + bt_ref[...]).astype(o_ref.dtype)


def _linear_res_ln_acc_kernel(x_ref, w_ref, b_ref, r_ref, g_ref, bt_ref,
                              o_ref, acc_ref, *, eps):
    @pl.when(pl.program_id(1) == 0)
    def _():
        acc_ref[...] = jnp.zeros(acc_ref.shape, acc_ref.dtype)

    acc_ref[...] += jnp.dot(x_ref[...], w_ref[...],
                            preferred_element_type=jnp.float32)

    @pl.when(pl.program_id(1) == pl.num_programs(1) - 1)
    def _():
        y = acc_ref[...] + b_ref[...] + r_ref[...].astype(jnp.float32)
        mu = jnp.mean(y, axis=-1, keepdims=True)
        var = jnp.mean(jnp.square(y - mu), axis=-1, keepdims=True)
        o_ref[...] = ((y - mu) * jax.lax.rsqrt(var + eps) * g_ref[...]
                      + bt_ref[...]).astype(o_ref.dtype)


def pallas_linear_residual_ln(x, w, b, residual, gamma, beta, *, eps=1e-12):
    """(x @ w + b + residual) then LayerNorm over the last dim, all fused."""
    M, K = x.shape
    N = w.shape[1]
    xb = x.astype(jnp.bfloat16)
    wb = w.astype(jnp.bfloat16)
    rb = residual.astype(jnp.bfloat16)
    b2 = b.reshape(1, N).astype(jnp.float32)
    g2 = gamma.reshape(1, N).astype(jnp.float32)
    bt2 = beta.reshape(1, N).astype(jnp.float32)

    def fits_full_k(tm):
        return (2 * 2 * tm * K + 2 * 2 * K * N + 2 * 2 * tm * N
                + 2 * 2 * tm * N + 3 * 4 * N) <= _VMEM_BUDGET

    tm = None
    for t in (1024, 512, 256, 128, 64, 32, 16, 8):
        cand = _tile(M, t, 8)
        if fits_full_k(cand):
            tm = cand
            break

    if tm is not None:
        return pl.pallas_call(
            partial(_linear_res_ln_full_kernel, eps=eps),
            grid=(M // tm,),
            in_specs=[
                pl.BlockSpec((tm, K), lambda i: (i, 0)),
                pl.BlockSpec((K, N), lambda i: (0, 0)),
                pl.BlockSpec((1, N), lambda i: (0, 0)),
                pl.BlockSpec((tm, N), lambda i: (i, 0)),
                pl.BlockSpec((1, N), lambda i: (0, 0)),
                pl.BlockSpec((1, N), lambda i: (0, 0)),
            ],
            out_specs=pl.BlockSpec((tm, N), lambda i: (i, 0)),
            out_shape=jax.ShapeDtypeStruct((M, N), jnp.bfloat16),
            compiler_params=pltpu.CompilerParams(
                dimension_semantics=("parallel",),
                vmem_limit_bytes=_VMEM_LIMIT),
        )(xb, wb, b2, rb, g2, bt2)

    # Fallback: K-tiled reduction with a resident f32 accumulator.
    tm = _tile(M, 256, 8)
    tk = _tile(K, 512, 128)
    return pl.pallas_call(
        partial(_linear_res_ln_acc_kernel, eps=eps),
        grid=(M // tm, K // tk),
        in_specs=[
            pl.BlockSpec((tm, tk), lambda i, k: (i, k)),
            pl.BlockSpec((tk, N), lambda i, k: (k, 0)),
            pl.BlockSpec((1, N), lambda i, k: (0, 0)),
            pl.BlockSpec((tm, N), lambda i, k: (i, 0)),
            pl.BlockSpec((1, N), lambda i, k: (0, 0)),
            pl.BlockSpec((1, N), lambda i, k: (0, 0)),
        ],
        out_specs=pl.BlockSpec((tm, N), lambda i, k: (i, 0)),
        out_shape=jax.ShapeDtypeStruct((M, N), jnp.bfloat16),
        scratch_shapes=[pltpu.VMEM((tm, N), jnp.float32)],
        compiler_params=pltpu.CompilerParams(
            dimension_semantics=("parallel", "arbitrary"),
            vmem_limit_bytes=_VMEM_LIMIT),
    )(xb, wb, b2, rb, g2, bt2)


# --------------------------------------------------------------------------
# Standalone LayerNorm kernel (for the embedding LN), bf16 out
# --------------------------------------------------------------------------
def _ln_kernel(x_ref, g_ref, b_ref, o_ref, *, eps):
    x = x_ref[...].astype(jnp.float32)
    mu = jnp.mean(x, axis=-1, keepdims=True)
    var = jnp.mean(jnp.square(x - mu), axis=-1, keepdims=True)
    o_ref[...] = ((x - mu) * jax.lax.rsqrt(var + eps) * g_ref[...]
                  + b_ref[...]).astype(o_ref.dtype)


def pallas_layer_norm(x2d, gamma, beta, *, eps=1e-12):
    M, H = x2d.shape
    tm = _tile(M, 1024, 8)
    return pl.pallas_call(
        partial(_ln_kernel, eps=eps),
        grid=(M // tm,),
        in_specs=[
            pl.BlockSpec((tm, H), lambda i: (i, 0)),
            pl.BlockSpec((1, H), lambda i: (0, 0)),
            pl.BlockSpec((1, H), lambda i: (0, 0)),
        ],
        out_specs=pl.BlockSpec((tm, H), lambda i: (i, 0)),
        out_shape=jax.ShapeDtypeStruct((M, H), jnp.bfloat16),
        compiler_params=pltpu.CompilerParams(
            dimension_semantics=("parallel",),
            vmem_limit_bytes=_VMEM_LIMIT),
    )(x2d.astype(jnp.float32),
      gamma.reshape(1, H).astype(jnp.float32),
      beta.reshape(1, H).astype(jnp.float32))


# --------------------------------------------------------------------------
# Flash attention on [B, S, H] layout (all heads per block, no XLA transposes)
# --------------------------------------------------------------------------
def _flash_attn_kernel(q_ref, k_ref, v_ref, bias_ref, o_ref,
                       m_sc, l_sc, acc_sc, *, n_heads, d_head):
    kv = pl.program_id(2)

    @pl.when(kv == 0)
    def _():
        m_sc[...] = jnp.full(m_sc.shape, -jnp.inf, m_sc.dtype)
        l_sc[...] = jnp.zeros(l_sc.shape, l_sc.dtype)
        acc_sc[...] = jnp.zeros(acc_sc.shape, acc_sc.dtype)

    q = q_ref[0]          # [tq, H] bf16 (1/sqrt(dH) already folded into Wq)
    kb = k_ref[0]         # [tk, H]
    vb = v_ref[0]         # [tk, H]
    bias = bias_ref[0]    # [1, tk] additive mask, broadcasts over rows

    # Online softmax per head; m/l are stored broadcast over each head's dH
    # lanes so the finalize step is a single vectorized normalize+store.
    for h in range(n_heads):
        sl = slice(h * d_head, (h + 1) * d_head)
        s = jax.lax.dot_general(q[:, sl], kb[:, sl], (((1,), (1,)), ((), ())),
                                preferred_element_type=jnp.float32)  # [tq,tk]
        s = s + bias
        m_prev = m_sc[:, sl]                                   # [tq, dH]
        row_max = jnp.max(s, axis=-1, keepdims=True)           # [tq, 1]
        m_new = jnp.maximum(m_prev, row_max)                   # [tq, dH]
        alpha = jnp.exp(m_prev - m_new)
        p = jnp.exp(s - m_new[:, :1])                          # [tq, tk]
        l_sc[:, sl] = alpha * l_sc[:, sl] + jnp.sum(p, axis=-1, keepdims=True)
        acc_sc[:, sl] = alpha * acc_sc[:, sl] + jnp.dot(
            p.astype(vb.dtype), vb[:, sl], preferred_element_type=jnp.float32)
        m_sc[:, sl] = m_new

    @pl.when(kv == pl.num_programs(2) - 1)
    def _():
        o_ref[0] = (acc_sc[...] *
                    pl.reciprocal(l_sc[...], approx=True)).astype(o_ref.dtype)


def pallas_flash_attention(q, k, v, bias, *, n_heads):
    """q,k,v: [B, S, H] bf16, bias: [B, 1, S] f32 -> bf16 [B, S, H]."""
    B, S, H = q.shape
    d_head = H // n_heads
    tq = _tile(S, 512, 8)
    tk = _tile(S, 512, 128)

    def need(tq_, tk_):
        return (2 * 2 * tq_ * H + 2 * 2 * 2 * tk_ * H + 2 * 2 * tq_ * H
                + 3 * 4 * tq_ * H + 2 * 4 * tk_)

    while need(tq, tk) > _VMEM_BUDGET:
        if tk > 128:
            ntk = _tile(S, tk // 2, 128)
            if ntk == tk:
                break
            tk = ntk
        elif tq > 8:
            ntq = _tile(S, tq // 2, 8)
            if ntq == tq:
                break
            tq = ntq
        else:
            break

    # TODO(synk): optionally skip fully-padded kv tiles via scalar-prefetched
    # per-batch sequence lengths (PrefetchScalarGridSpec + pl.when).
    return pl.pallas_call(
        partial(_flash_attn_kernel, n_heads=n_heads, d_head=d_head),
        grid=(B, S // tq, S // tk),
        in_specs=[
            pl.BlockSpec((1, tq, H), lambda b, qi, ki: (b, qi, 0)),
            pl.BlockSpec((1, tk, H), lambda b, qi, ki: (b, ki, 0)),
            pl.BlockSpec((1, tk, H), lambda b, qi, ki: (b, ki, 0)),
            pl.BlockSpec((1, 1, tk), lambda b, qi, ki: (b, 0, ki)),
        ],
        out_specs=pl.BlockSpec((1, tq, H), lambda b, qi, ki: (b, qi, 0)),
        out_shape=jax.ShapeDtypeStruct((B, S, H), jnp.bfloat16),
        scratch_shapes=[pltpu.VMEM((tq, H), jnp.float32),
                        pltpu.VMEM((tq, H), jnp.float32),
                        pltpu.VMEM((tq, H), jnp.float32)],
        compiler_params=pltpu.CompilerParams(
            dimension_semantics=("parallel", "parallel", "arbitrary"),
            vmem_limit_bytes=_VMEM_LIMIT),
    )(q, k, v, bias)


# --------------------------------------------------------------------------
# Small deterministic BERT-style encoder (plain-JAX glue around Pallas kernels)
# --------------------------------------------------------------------------
def bert_forward(p, ids, mask, token_type_ids, *, n_heads):
    B, S = ids.shape
    H = p["word_emb"].shape[1]

    # TODO(synk): embedding-table gather stays in XLA (no clean Pallas gather).
    x = (p["word_emb"][ids]
         + p["pos_emb"][jnp.arange(S)][None, :, :]
         + p["type_emb"][token_type_ids])
    x2 = pallas_layer_norm(x.reshape(B * S, H), p["emb_ln_g"], p["emb_ln_b"])

    bias = ((1.0 - mask.astype(jnp.float32)) * -10000.0)[:, None, :]  # [B,1,S]

    for lyr in p["layers"]:
        # Separate lane-dense Q/K/V projections in [B, S, H] layout: no XLA
        # transposes anywhere around attention (scale folded into Wq/bq).
        q = pallas_linear(x2, lyr["wq"], lyr["bq"])
        k = pallas_linear(x2, lyr["wk"], lyr["bk"])
        v = pallas_linear(x2, lyr["wv"], lyr["bv"])
        ctx = pallas_flash_attention(
            q.reshape(B, S, H), k.reshape(B, S, H), v.reshape(B, S, H),
            bias, n_heads=n_heads)                                     # bf16

        # Attention output projection + residual + LayerNorm, fused.
        x2 = pallas_linear_residual_ln(ctx.reshape(B * S, H),
                                       lyr["wo"], lyr["bo"],
                                       x2, lyr["ln1_g"], lyr["ln1_b"])

        # FFN: matmul + bias + GELU fused; second matmul + residual + LN fused.
        f = pallas_linear(x2, lyr["w1"], lyr["b1"], activation="gelu")
        x2 = pallas_linear_residual_ln(f, lyr["w2"], lyr["b2"],
                                       x2, lyr["ln2_g"], lyr["ln2_b"])

    seq_out = x2.reshape(B, S, H)
    pooled = pallas_linear(seq_out[:, 0, :], p["wp"], p["bp"], activation="tanh")
    return seq_out, pooled


# --------------------------------------------------------------------------
# TRIPPY forward
# --------------------------------------------------------------------------
def trippy_forward(params, ids, mask, token_type_ids, inform_aux, ds_aux,
                   *, n_heads, n_slots):
    seq_out, pooled = bert_forward(
        params["bert"], ids, mask, token_type_ids, n_heads=n_heads
    )
    # nn.Dropout in eval mode == identity.

    B, S, H = seq_out.shape
    n_oper = params["w_oper"].shape[2]
    n_ref = n_slots + 1
    Hcat = H + 2 * n_slots

    # ---- Pooled heads: oper + refer for ALL slots in one lane-dense matmul.
    # The inform/ds aux projections are folded into the weights, so those two
    # tiny matmul kernels disappear entirely.
    W_cat = jnp.concatenate([
        params["w_oper"].transpose(1, 0, 2).reshape(Hcat, n_slots * n_oper),
        params["w_refer"].transpose(1, 0, 2).reshape(Hcat, n_slots * n_ref),
    ], axis=1)
    b_cat = jnp.concatenate([params["b_oper"].reshape(-1),
                             params["b_refer"].reshape(-1)])
    W_h = W_cat[:H]
    W_i = params["w_inform"] @ W_cat[H:H + n_slots]
    W_d = params["w_ds"] @ W_cat[H + n_slots:]
    b_all = (b_cat
             + params["b_inform"] @ W_cat[H:H + n_slots]
             + params["b_ds"] @ W_cat[H + n_slots:])
    W_all = jnp.concatenate([W_h, W_i, W_d], axis=0)     # [H+2*ns, n_out]

    n_out = n_slots * (n_oper + n_ref)
    n_out_pad = ((n_out + 127) // 128) * 128             # lane-dense stores
    W_all = jnp.pad(W_all, ((0, 0), (0, n_out_pad - n_out)))
    b_all = jnp.pad(b_all, (0, n_out_pad - n_out))

    pooled_cat = jnp.concatenate(
        [pooled.astype(jnp.float32), inform_aux, ds_aux], axis=1)
    pooled_logits = pallas_linear(pooled_cat, W_all, b_all,
                                  out_dtype=jnp.float32)[:, :n_out]
    oper_all = pooled_logits[:, :n_slots * n_oper].reshape(B, n_slots, n_oper)
    refer_all = pooled_logits[:, n_slots * n_oper:].reshape(B, n_slots, n_ref)

    # ---- Span head: ALL slots in one matmul, zero-padded to 128 columns so
    # the [B*S, .] output stores are lane-dense; slice the padding off outside.
    n_span = 2 * n_slots
    n_span_pad = ((n_span + 127) // 128) * 128
    W_span = params["w_span"].transpose(1, 0, 2).reshape(H, n_span)
    W_span = jnp.pad(W_span, ((0, 0), (0, n_span_pad - n_span)))
    b_span = jnp.pad(params["b_span"].reshape(-1), (0, n_span_pad - n_span))
    span = pallas_linear(seq_out.reshape(B * S, H), W_span, b_span,
                         out_dtype=jnp.float32)[:, :n_span]
    span = span.reshape(B, S, n_slots, 2)

    slots_start_logits = [span[:, :, s, 0] for s in range(n_slots)]
    slots_end_logits = [span[:, :, s, 1] for s in range(n_slots)]
    slots_oper_logits = [oper_all[:, s, :] for s in range(n_slots)]
    slots_refer_logits = [refer_all[:, s, :] for s in range(n_slots)]
    return slots_start_logits, slots_end_logits, slots_oper_logits, slots_refer_logits


# --------------------------------------------------------------------------
# Deterministic parameter construction
# --------------------------------------------------------------------------
def init_params(key, *, vocab, n_types, max_pos, hid, n_heads, ffn, n_layers,
                n_slots, n_oper):
    dH = hid // n_heads
    scale = 1.0 / (dH ** 0.5)
    keys = iter(jax.random.split(key, 512))
    nrm = lambda shape, s=0.02: (
        s * jax.random.normal(next(keys), shape, dtype=jnp.float32)
    )

    bert = {
        "word_emb": nrm((vocab, hid)),
        "pos_emb": nrm((max_pos, hid)),
        "type_emb": nrm((n_types, hid)),
        "emb_ln_g": jnp.ones((hid,), jnp.float32),
        "emb_ln_b": jnp.zeros((hid,), jnp.float32),
        "layers": [],
        "wp": nrm((hid, hid)),
        "bp": nrm((hid,)),
    }
    for _ in range(n_layers):
        wq, wk, wv = nrm((hid, hid)), nrm((hid, hid)), nrm((hid, hid))
        bq, bk, bv = nrm((hid,)), nrm((hid,)), nrm((hid,))
        bert["layers"].append({
            # Attention scale folded into the Q projection.
            "wq": wq * scale, "bq": bq * scale,
            "wk": wk, "bk": bk,
            "wv": wv, "bv": bv,
            "wo": nrm((hid, hid)), "bo": nrm((hid,)),
            "ln1_g": jnp.ones((hid,), jnp.float32),
            "ln1_b": jnp.zeros((hid,), jnp.float32),
            "w1": nrm((hid, ffn)), "b1": nrm((ffn,)),
            "w2": nrm((ffn, hid)), "b2": nrm((hid,)),
            "ln2_g": jnp.ones((hid,), jnp.float32),
            "ln2_b": jnp.zeros((hid,), jnp.float32),
        })

    aux_dim = 2 * n_slots
    params = {
        "bert": bert,
        "w_inform": nrm((n_slots, n_slots)), "b_inform": nrm((n_slots,)),
        "w_ds": nrm((n_slots, n_slots)), "b_ds": nrm((n_slots,)),
        "w_oper": nrm((n_slots, hid + aux_dim, n_oper)),
        "b_oper": nrm((n_slots, n_oper)),
        "w_span": nrm((n_slots, hid, 2)),
        "b_span": nrm((n_slots, 2)),
        "w_refer": nrm((n_slots, hid + aux_dim, n_slots + 1)),
        "b_refer": nrm((n_slots, n_slots + 1)),
    }
    return params


# --------------------------------------------------------------------------
if __name__ == "__main__":
    # Small synthetic configuration.
    B, S = 2, 8
    HID = 32
    N_HEADS = 4
    FFN = 64
    N_LAYERS = 2
    VOCAB = 50
    N_TYPES = 2
    MAX_POS = 16
    N_SLOTS = 5
    N_OPER = 4

    key = jax.random.PRNGKey(0)
    k_par, k_ids, k_types, k_inf, k_ds = jax.random.split(key, 5)

    params = init_params(
        k_par, vocab=VOCAB, n_types=N_TYPES, max_pos=MAX_POS, hid=HID,
        n_heads=N_HEADS, ffn=FFN, n_layers=N_LAYERS,
        n_slots=N_SLOTS, n_oper=N_OPER,
    )

    ids = jax.random.randint(k_ids, (B, S), 0, VOCAB, dtype=jnp.int32)
    token_type_ids = jax.random.randint(k_types, (B, S), 0, N_TYPES, dtype=jnp.int32)
    mask = jnp.ones((B, S), jnp.int32).at[1, S - 2:].set(0)   # pad tail of example 1
    inform_aux = jax.random.normal(k_inf, (B, N_SLOTS), dtype=jnp.float32)
    ds_aux = jax.random.normal(k_ds, (B, N_SLOTS), dtype=jnp.float32)

    fwd = jax.jit(partial(trippy_forward, n_heads=N_HEADS, n_slots=N_SLOTS))
    starts, ends, opers, refers = fwd(
        params, ids, mask, token_type_ids, inform_aux, ds_aux
    )
    jax.block_until_ready((starts, ends, opers, refers))

    assert len(starts) == N_SLOTS and starts[0].shape == (B, S)
    assert ends[0].shape == (B, S)
    assert opers[0].shape == (B, N_OPER)
    assert refers[0].shape == (B, N_SLOTS + 1)
    assert all(bool(jnp.all(jnp.isfinite(t))) for t in starts + ends + opers + refers)
    print("KERNEL_OK")
</pallas_src>

<mosaic_0001>
module attributes {stable_mosaic.version = 11 : i64} {
  func.func @_linear_full_kernel(%arg0: i32, %arg1: i32, %arg2: memref<16x32xbf16, #tpu.memory_space<vmem>>, %arg3: memref<32x32xbf16, #tpu.memory_space<vmem>>, %arg4: memref<1x32xf32, #tpu.memory_space<vmem>>, %arg5: memref<16x32xbf16, #tpu.memory_space<vmem>>) attributes {dimension_semantics = [#tpu.dimension_semantics<parallel>, #tpu.dimension_semantics<parallel>], iteration_bounds = array<i64: 1, 1>, scalar_prefetch = 0 : i64, scratch_operands = 0 : i64, tpu.core_type = #tpu.core_type<tc>, window_params = [{transform_indices = @transform_0, window_bounds = array<i64: 16, 32>}, {transform_indices = @transform_1, window_bounds = array<i64: 32, 32>}, {transform_indices = @transform_2, window_bounds = array<i64: 1, 32>}, {transform_indices = @transform_3, window_bounds = array<i64: 16, 32>}]} {
    %c0 = arith.constant 0 : index
    %c0_0 = arith.constant 0 : index
    %0 = vector.load %arg2[%c0, %c0_0] : memref<16x32xbf16, #tpu.memory_space<vmem>>, vector<16x32xbf16>
    %c0_1 = arith.constant 0 : index
    %c0_2 = arith.constant 0 : index
    %1 = vector.load %arg3[%c0_1, %c0_2] : memref<32x32xbf16, #tpu.memory_space<vmem>>, vector<32x32xbf16>
    %cst = arith.constant dense<0.000000e+00> : vector<16x32xf32>
    %2 = tpu.matmul %0, %1, %cst {dimension_numbers = #tpu.dot_dimension_numbers<[1], [0], [0], [1], [0, 0, 1, 1], [], []>} : vector<16x32xbf16>, vector<32x32xbf16>, vector<16x32xf32> -> vector<16x32xf32>
    %c0_3 = arith.constant 0 : index
    %c0_4 = arith.constant 0 : index
    %3 = vector.load %arg4[%c0_3, %c0_4] : memref<1x32xf32, #tpu.memory_space<vmem>>, vector<1x32xf32>
    %4 = vector.broadcast %3 : vector<1x32xf32> to vector<16x32xf32>
    %5 = arith.addf %2, %4 : vector<16x32xf32>
    %6 = arith.truncf %5 : vector<16x32xf32> to vector<16x32xbf16>
    %c0_5 = arith.constant 0 : index
    %c0_6 = arith.constant 0 : index
    %7 = vector.load %arg5[%c0_5, %c0_6] : memref<16x32xbf16, #tpu.memory_space<vmem>>, vector<16x32xbf16>
    tpu.vector_store %arg5[%c0_5, %c0_6], %6 {strides = array<i32>} : memref<16x32xbf16, #tpu.memory_space<vmem>>, vector<16x32xbf16>,
    return
  }
  func.func @transform_0(%arg0: i32, %arg1: i32) -> (i32, i32) {
    %c0_i32 = arith.constant 0 : i32
    %c0_i32_0 = arith.constant 0 : i32
    return %arg0, %c0_i32 : i32, i32
  }
  func.func @transform_1(%arg0: i32, %arg1: i32) -> (i32, i32) {
    %c0_i32 = arith.constant 0 : i32
    %c0_i32_0 = arith.constant 0 : i32
    return %c0_i32, %arg1 : i32, i32
  }
  func.func @transform_2(%arg0: i32, %arg1: i32) -> (i32, i32) {
    %c0_i32 = arith.constant 0 : i32
    %c0_i32_0 = arith.constant 0 : i32
    return %c0_i32, %arg1 : i32, i32
  }
  func.func @transform_3(%arg0: i32, %arg1: i32) -> (i32, i32) {
    %c0_i32 = arith.constant 0 : i32
    return %arg0, %arg1 : i32, i32
  }
}

module attributes {stable_mosaic.version = 11 : i64} {
  func.func @_ln_kernel(%arg0: i32, %arg1: memref<16x32xf32, #tpu.memory_space<vmem>>, %arg2: memref<1x32xf32, #tpu.memory_space<vmem>>, %arg3: memref<1x32xf32, #tpu.memory_space<vmem>>, %arg4: memref<16x32xbf16, #tpu.memory_space<vmem>>) attributes {dimension_semantics = [#tpu.dimension_semantics<parallel>], iteration_bounds = array<i64: 1>, scalar_prefetch = 0 : i64, scratch_operands = 0 : i64, tpu.core_type = #tpu.core_type<tc>, window_params = [{transform_indices = @transform_0, window_bounds = array<i64: 16, 32>}, {pipeline_mode = #tpu.pipeline_mode<synchronous>, transform_indices = @transform_1, window_bounds = array<i64: 1, 32>}, {pipeline_mode = #tpu.pipeline_mode<synchronous>, transform_indices = @transform_2, window_bounds = array<i64: 1, 32>}, {transform_indices = @transform_3, window_bounds = array<i64: 16, 32>}]} {
    %c0 = arith.constant 0 : index
    %c0_0 = arith.constant 0 : index
    %0 = vector.load %arg1[%c0, %c0_0] : memref<16x32xf32, #tpu.memory_space<vmem>>, vector<16x32xf32>
    %cst = arith.constant dense<0.000000e+00> : vector<16xf32>
    %1 = vector.multi_reduction <add>, %0, %cst [1] : vector<16x32xf32> to vector<16xf32>
    %2 = vector.shape_cast %1 : vector<16xf32> to vector<16x1xf32>
    %cst_1 = arith.constant 3.200000e+01 : f32
    %3 = vector.broadcast %cst_1 : f32 to vector<16x1xf32>
    %4 = arith.divf %2, %3 : vector<16x1xf32>
    %5 = vector.broadcast %4 : vector<16x1xf32> to vector<16x32xf32>
    %6 = arith.subf %0, %5 : vector<16x32xf32>
    %7 = arith.mulf %6, %6 : vector<16x32xf32>
    %cst_2 = arith.constant dense<0.000000e+00> : vector<16xf32>
    %8 = vector.multi_reduction <add>, %7, %cst_2 [1] : vector<16x32xf32> to vector<16xf32>
    %9 = vector.shape_cast %8 : vector<16xf32> to vector<16x1xf32>
    %cst_3 = arith.constant 3.200000e+01 : f32
    %10 = vector.broadcast %cst_3 : f32 to vector<16x1xf32>
    %11 = arith.divf %9, %10 : vector<16x1xf32>
    %12 = vector.broadcast %4 : vector<16x1xf32> to vector<16x32xf32>
    %13 = arith.subf %0, %12 : vector<16x32xf32>
    %cst_4 = arith.constant 9.99999996E-13 : f32
    %14 = vector.broadcast %cst_4 : f32 to vector<16x1xf32>
    %15 = arith.addf %11, %14 : vector<16x1xf32>
    %16 = math.rsqrt %15 : vector<16x1xf32>
    %17 = vector.broadcast %16 : vector<16x1xf32> to vector<16x32xf32>
    %18 = arith.mulf %13, %17 : vector<16x32xf32>
    %c0_5 = arith.constant 0 : index
    %c0_6 = arith.constant 0 : index
    %19 = vector.load %arg2[%c0_5, %c0_6] : memref<1x32xf32, #tpu.memory_space<vmem>>, vector<1x32xf32>
    %20 = vector.broadcast %19 : vector<1x32xf32> to vector<16x32xf32>
    %21 = arith.mulf %18, %20 : vector<16x32xf32>
    %c0_7 = arith.constant 0 : index
    %c0_8 = arith.constant 0 : index
    %22 = vector.load %arg3[%c0_7, %c0_8] : memref<1x32xf32, #tpu.memory_space<vmem>>, vector<1x32xf32>
    %23 = vector.broadcast %22 : vector<1x32xf32> to vector<16x32xf32>
    %24 = arith.addf %21, %23 : vector<16x32xf32>
    %25 = arith.truncf %24 : vector<16x32xf32> to vector<16x32xbf16>
    %c0_9 = arith.constant 0 : index
    %c0_10 = arith.constant 0 : index
    %26 = vector.load %arg4[%c0_9, %c0_10] : memref<16x32xbf16, #tpu.memory_space<vmem>>, vector<16x32xbf16>
    tpu.vector_store %arg4[%c0_9, %c0_10], %25 {strides = array<i32>} : memref<16x32xbf16, #tpu.memory_space<vmem>>, vector<16x32xbf16>,
    return
  }
  func.func @transform_0(%arg0: i32) -> (i32, i32) {
    %c0_i32 = arith.constant 0 : i32
    %c0_i32_0 = arith.constant 0 : i32
    return %arg0, %c0_i32 : i32, i32
  }
  func.func @transform_1(%arg0: i32) -> (i32, i32) {
    %c0_i32 = arith.constant 0 : i32
    %c0_i32_0 = arith.constant 0 : i32
    %c0_i32_1 = arith.constant 0 : i32
    return %c0_i32, %c0_i32_0 : i32, i32
  }
  func.func @transform_2(%arg0: i32) -> (i32, i32) {
    %c0_i32 = arith.constant 0 : i32
    %c0_i32_0 = arith.constant 0 : i32
    %c0_i32_1 = arith.constant 0 : i32
    return %c0_i32, %c0_i32_0 : i32, i32
  }
  func.func @transform_3(%arg0: i32) -> (i32, i32) {
    %c0_i32 = arith.constant 0 : i32
    %c0_i32_0 = arith.constant 0 : i32
    return %arg0, %c0_i32 : i32, i32
  }
}

module attributes {stable_mosaic.version = 11 : i64} {
  func.func @_linear_res_ln_full_kernel(%arg0: i32, %arg1: memref<16x32xbf16, #tpu.memory_space<vmem>>, %arg2: memref<32x32xbf16, #tpu.memory_space<vmem>>, %arg3: memref<1x32xf32, #tpu.memory_space<vmem>>, %arg4: memref<16x32xbf16, #tpu.memory_space<vmem>>, %arg5: memref<1x32xf32, #tpu.memory_space<vmem>>, %arg6: memref<1x32xf32, #tpu.memory_space<vmem>>, %arg7: memref<16x32xbf16, #tpu.memory_space<vmem>>) attributes {dimension_semantics = [#tpu.dimension_semantics<parallel>], iteration_bounds = array<i64: 1>, scalar_prefetch = 0 : i64, scratch_operands = 0 : i64, tpu.core_type = #tpu.core_type<tc>, window_params = [{transform_indices = @transform_0, window_bounds = array<i64: 16, 32>}, {pipeline_mode = #tpu.pipeline_mode<synchronous>, transform_indices = @transform_1, window_bounds = array<i64: 32, 32>}, {pipeline_mode = #tpu.pipeline_mode<synchronous>, transform_indices = @transform_2, window_bounds = array<i64: 1, 32>}, {transform_indices = @transform_3, window_bounds = array<i64: 16, 32>}, {pipeline_mode = #tpu.pipeline_mode<synchronous>, transform_indices = @transform_4, window_bounds = array<i64: 1, 32>}, {pipeline_mode = #tpu.pipeline_mode<synchronous>, transform_indices = @transform_5, window_bounds = array<i64: 1, 32>}, {transform_indices = @transform_6, window_bounds = array<i64: 16, 32>}]} {
    %c0 = arith.constant 0 : index
    %c0_0 = arith.constant 0 : index
    %0 = vector.load %arg1[%c0, %c0_0] : memref<16x32xbf16, #tpu.memory_space<vmem>>, vector<16x32xbf16>
    %c0_1 = arith.constant 0 : index
    %c0_2 = arith.constant 0 : index
    %1 = vector.load %arg2[%c0_1, %c0_2] : memref<32x32xbf16, #tpu.memory_space<vmem>>, vector<32x32xbf16>
    %cst = arith.constant dense<0.000000e+00> : vector<16x32xf32>
    %2 = tpu.matmul %0, %1, %cst {dimension_numbers = #tpu.dot_dimension_numbers<[1], [0], [0], [1], [0, 0, 1, 1], [], []>} : vector<16x32xbf16>, vector<32x32xbf16>, vector<16x32xf32> -> vector<16x32xf32>
    %c0_3 = arith.constant 0 : index
    %c0_4 = arith.constant 0 : index
    %3 = vector.load %arg3[%c0_3, %c0_4] : memref<1x32xf32, #tpu.memory_space<vmem>>, vector<1x32xf32>
    %4 = vector.broadcast %3 : vector<1x32xf32> to vector<16x32xf32>
    %5 = arith.addf %2, %4 : vector<16x32xf32>
    %c0_5 = arith.constant 0 : index
    %c0_6 = arith.constant 0 : index
    %6 = vector.load %arg4[%c0_5, %c0_6] : memref<16x32xbf16, #tpu.memory_space<vmem>>, vector<16x32xbf16>
    %7 = arith.extf %6 : vector<16x32xbf16> to vector<16x32xf32>
    %8 = arith.addf %5, %7 : vector<16x32xf32>
    %cst_7 = arith.constant dense<0.000000e+00> : vector<16xf32>
    %9 = vector.multi_reduction <add>, %8, %cst_7 [1] : vector<16x32xf32> to vector<16xf32>
    %10 = vector.shape_cast %9 : vector<16xf32> to vector<16x1xf32>
    %cst_8 = arith.constant 3.200000e+01 : f32
    %11 = vector.broadcast %cst_8 : f32 to vector<16x1xf32>
    %12 = arith.divf %10, %11 : vector<16x1xf32>
    %13 = vector.broadcast %12 : vector<16x1xf32> to vector<16x32xf32>
    %14 = arith.subf %8, %13 : vector<16x32xf32>
    %15 = arith.mulf %14, %14 : vector<16x32xf32>
    %cst_9 = arith.constant dense<0.000000e+00> : vector<16xf32>
    %16 = vector.multi_reduction <add>, %15, %cst_9 [1] : vector<16x32xf32> to vector<16xf32>
    %17 = vector.shape_cast %16 : vector<16xf32> to vector<16x1xf32>
    %cst_10 = arith.constant 3.200000e+01 : f32
    %18 = vector.broadcast %cst_10 : f32 to vector<16x1xf32>
    %19 = arith.divf %17, %18 : vector<16x1xf32>
    %20 = vector.broadcast %12 : vector<16x1xf32> to vector<16x32xf32>
    %21 = arith.subf %8, %20 : vector<16x32xf32>
    %cst_11 = arith.constant 9.99999996E-13 : f32
    %22 = vector.broadcast %cst_11 : f32 to vector<16x1xf32>
    %23 = arith.addf %19, %22 : vector<16x1xf32>
    %24 = math.rsqrt %23 : vector<16x1xf32>
    %25 = vector.broadcast %24 : vector<16x1xf32> to vector<16x32xf32>
    %26 = arith.mulf %21, %25 : vector<16x32xf32>
    %c0_12 = arith.constant 0 : index
    %c0_13 = arith.constant 0 : index
    %27 = vector.load %arg5[%c0_12, %c0_13] : memref<1x32xf32, #tpu.memory_space<vmem>>, vector<1x32xf32>
    %28 = vector.broadcast %27 : vector<1x32xf32> to vector<16x32xf32>
    %29 = arith.mulf %26, %28 : vector<16x32xf32>
    %c0_14 = arith.constant 0 : index
    %c0_15 = arith.constant 0 : index
    %30 = vector.load %arg6[%c0_14, %c0_15] : memref<1x32xf32, #tpu.memory_space<vmem>>, vector<1x32xf32>
    %31 = vector.broadcast %30 : vector<1x32xf32> to vector<16x32xf32>
    %32 = arith.addf %29, %31 : vector<16x32xf32>
    %33 = arith.truncf %32 : vector<16x32xf32> to vector<16x32xbf16>
    %c0_16 = arith.constant 0 : index
    %c0_17 = arith.constant 0 : index
    %34 = vector.load %arg7[%c0_16, %c0_17] : memref<16x32xbf16, #tpu.memory_space<vmem>>, vector<16x32xbf16>
    tpu.vector_store %arg7[%c0_16, %c0_17], %33 {strides = array<i32>} : memref<16x32xbf16, #tpu.memory_space<vmem>>, vector<16x32xbf16>,
    return
  }
  func.func @transform_0(%arg0: i32) -> (i32, i32) {
    %c0_i32 = arith.constant 0 : i32
    %c0_i32_0 = arith.constant 0 : i32
    return %arg0, %c0_i32 : i32, i32
  }
  func.func @transform_1(%arg0: i32) -> (i32, i32) {
    %c0_i32 = arith.constant 0 : i32
    %c0_i32_0 = arith.constant 0 : i32
    %c0_i32_1 = arith.constant 0 : i32
    return %c0_i32, %c0_i32_0 : i32, i32
  }
  func.func @transform_2(%arg0: i32) -> (i32, i32) {
    %c0_i32 = arith.constant 0 : i32
    %c0_i32_0 = arith.constant 0 : i32
    %c0_i32_1 = arith.constant 0 : i32
    return %c0_i32, %c0_i32_0 : i32, i32
  }
  func.func @transform_3(%arg0: i32) -> (i32, i32) {
    %c0_i32 = arith.constant 0 : i32
    %c0_i32_0 = arith.constant 0 : i32
    return %arg0, %c0_i32 : i32, i32
  }
  func.func @transform_4(%arg0: i32) -> (i32, i32) {
    %c0_i32 = arith.constant 0 : i32
    %c0_i32_0 = arith.constant 0 : i32
    %c0_i32_1 = arith.constant 0 : i32
    return %c0_i32, %c0_i32_0 : i32, i32
  }
  func.func @transform_5(%arg0: i32) -> (i32, i32) {
    %c0_i32 = arith.constant 0 : i32
    %c0_i32_0 = arith.constant 0 : i32
    %c0_i32_1 = arith.constant 0 : i32
    return %c0_i32, %c0_i32_0 : i32, i32
  }
  func.func @transform_6(%arg0: i32) -> (i32, i32) {
    %c0_i32 = arith.constant 0 : i32
    %c0_i32_0 = arith.constant 0 : i32
    return %arg0, %c0_i32 : i32, i32
  }
}

module attributes {stable_mosaic.version = 11 : i64} {
  func.func @_flash_attn_kernel(%arg0: i32, %arg1: i32, %arg2: i32, %arg3: memref<1x8x32xbf16, #tpu.memory_space<vmem>>, %arg4: memref<1x8x32xbf16, #tpu.memory_space<vmem>>, %arg5: memref<1x8x32xbf16, #tpu.memory_space<vmem>>, %arg6: memref<1x1x8xf32, #tpu.memory_space<vmem>>, %arg7: memref<1x8x32xbf16, #tpu.memory_space<vmem>>, %arg8: memref<8x32xf32, #tpu.memory_space<vmem>>, %arg9: memref<8x32xf32, #tpu.memory_space<vmem>>, %arg10: memref<8x32xf32, #tpu.memory_space<vmem>>) attributes {dimension_semantics = [#tpu.dimension_semantics<parallel>, #tpu.dimension_semantics<parallel>, #tpu.dimension_semantics<arbitrary>], iteration_bounds = array<i64: 2, 1, 1>, scalar_prefetch = 0 : i64, scratch_operands = 3 : i64, tpu.core_type = #tpu.core_type<tc>, window_params = [{transform_indices = @transform_0, window_bounds = array<i64: 1, 8, 32>}, {transform_indices = @transform_1, window_bounds = array<i64: 1, 8, 32>}, {transform_indices = @transform_2, window_bounds = array<i64: 1, 8, 32>}, {transform_indices = @transform_3, window_bounds = array<i64: 1, 1, 8>}, {transform_indices = @transform_4, window_bounds = array<i64: 1, 8, 32>}]} {
    %c0_i32 = arith.constant 0 : i32
    %0 = arith.cmpi eq, %arg2, %c0_i32 : i32
    %1 = arith.extui %0 : i1 to i32
    %c0_i32_0 = arith.constant 0 : i32
    %2 = arith.cmpi ne, %1, %c0_i32_0 : i32
    scf.if %2 {
      %cst_74 = arith.constant 0xFF800000 : f32
      %138 = vector.broadcast %cst_74 : f32 to vector<8x32xf32>
      %c0_75 = arith.constant 0 : index
      %c0_76 = arith.constant 0 : index
      %139 = vector.load %arg8[%c0_75, %c0_76] : memref<8x32xf32, #tpu.memory_space<vmem>>, vector<8x32xf32>
      tpu.vector_store %arg8[%c0_75, %c0_76], %138 {strides = array<i32>} : memref<8x32xf32, #tpu.memory_space<vmem>>, vector<8x32xf32>,
      %cst_77 = arith.constant 0.000000e+00 : f32
      %140 = vector.broadcast %cst_77 : f32 to vector<8x32xf32>
      %c0_78 = arith.constant 0 : index
      %c0_79 = arith.constant 0 : index
      %141 = vector.load %arg9[%c0_78, %c0_79] : memref<8x32xf32, #tpu.memory_space<vmem>>, vector<8x32xf32>
      tpu.vector_store %arg9[%c0_78, %c0_79], %140 {strides = array<i32>} : memref<8x32xf32, #tpu.memory_space<vmem>>, vector<8x32xf32>,
      %cst_80 = arith.constant 0.000000e+00 : f32
      %142 = vector.broadcast %cst_80 : f32 to vector<8x32xf32>
      %c0_81 = arith.constant 0 : index
      %c0_82 = arith.constant 0 : index
      %143 = vector.load %arg10[%c0_81, %c0_82] : memref<8x32xf32, #tpu.memory_space<vmem>>, vector<8x32xf32>
      tpu.vector_store %arg10[%c0_81, %c0_82], %142 {strides = array<i32>} : memref<8x32xf32, #tpu.memory_space<vmem>>, vector<8x32xf32>,
    } else {
    }
    %c0 = arith.constant 0 : index
    %c0_1 = arith.constant 0 : index
    %c0_2 = arith.constant 0 : index
    %3 = vector.load %arg3[%c0, %c0_1, %c0_2] : memref<1x8x32xbf16, #tpu.memory_space<vmem>>, vector<1x8x32xbf16>
    %4 = vector.shape_cast %3 : vector<1x8x32xbf16> to vector<8x32xbf16>
    %c0_3 = arith.constant 0 : index
    %c0_4 = arith.constant 0 : index
    %c0_5 = arith.constant 0 : index
    %5 = vector.load %arg4[%c0_3, %c0_4, %c0_5] : memref<1x8x32xbf16, #tpu.memory_space<vmem>>, vector<1x8x32xbf16>
    %6 = vector.shape_cast %5 : vector<1x8x32xbf16> to vector<8x32xbf16>
    %c0_6 = arith.constant 0 : index
    %c0_7 = arith.constant 0 : index
    %c0_8 = arith.constant 0 : index
    %7 = vector.load %arg5[%c0_6, %c0_7, %c0_8] : memref<1x8x32xbf16, #tpu.memory_space<vmem>>, vector<1x8x32xbf16>
    %8 = vector.shape_cast %7 : vector<1x8x32xbf16> to vector<8x32xbf16>
    %c0_9 = arith.constant 0 : index
    %c0_10 = arith.constant 0 : index
    %c0_11 = arith.constant 0 : index
    %9 = vector.load %arg6[%c0_9, %c0_10, %c0_11] : memref<1x1x8xf32, #tpu.memory_space<vmem>>, vector<1x1x8xf32>
    %10 = vector.shape_cast %9 : vector<1x1x8xf32> to vector<1x8xf32>
    %11 = vector.extract_strided_slice %4 {offsets = [0, 0], sizes = [8, 8], strides = [1, 1]} : vector<8x32xbf16> to vector<8x8xbf16>
    %12 = vector.extract_strided_slice %6 {offsets = [0, 0], sizes = [8, 8], strides = [1, 1]} : vector<8x32xbf16> to vector<8x8xbf16>
    %cst = arith.constant dense<0.000000e+00> : vector<8x8xf32>
    %13 = tpu.matmul %11, %12, %cst {dimension_numbers = #tpu.dot_dimension_numbers<[1], [1], [0], [0], [0, 0, 1, 0], [], []>} : vector<8x8xbf16>, vector<8x8xbf16>, vector<8x8xf32> -> vector<8x8xf32>
    %14 = vector.broadcast %10 : vector<1x8xf32> to vector<8x8xf32>
    %15 = arith.addf %13, %14 : vector<8x8xf32>
    %c0_12 = arith.constant 0 : index
    %c0_13 = arith.constant 0 : index
    %16 = vector.load %arg8[%c0_12, %c0_13] : memref<8x32xf32, #tpu.memory_space<vmem>>, vector<8x8xf32>
    %cst_14 = arith.constant dense<0xFF800000> : vector<8xf32>
    %17 = vector.multi_reduction <maximumf>, %15, %cst_14 [1] : vector<8x8xf32> to vector<8xf32>
    %18 = vector.shape_cast %17 : vector<8xf32> to vector<8x1xf32>
    %19 = vector.broadcast %18 : vector<8x1xf32> to vector<8x8xf32>
    %20 = arith.maximumf %16, %19 : vector<8x8xf32>
    %21 = arith.subf %16, %20 : vector<8x8xf32>
    %22 = math.exp %21 : vector<8x8xf32>
    %23 = vector.extract_strided_slice %20 {offsets = [0, 0], sizes = [8, 1], strides = [1, 1]} : vector<8x8xf32> to vector<8x1xf32>
    %24 = vector.broadcast %23 : vector<8x1xf32> to vector<8x8xf32>
    %25 = arith.subf %15, %24 : vector<8x8xf32>
    %26 = math.exp %25 : vector<8x8xf32>
    %c0_15 = arith.constant 0 : index
    %c0_16 = arith.constant 0 : index
    %27 = vector.load %arg9[%c0_15, %c0_16] : memref<8x32xf32, #tpu.memory_space<vmem>>, vector<8x8xf32>
    %28 = arith.mulf %22, %27 : vector<8x8xf32>
    %cst_17 = arith.constant dense<0.000000e+00> : vector<8xf32>
    %29 = vector.multi_reduction <add>, %26, %cst_17 [1] : vector<8x8xf32> to vector<8xf32>
    %30 = vector.shape_cast %29 : vector<8xf32> to vector<8x1xf32>
    %31 = vector.broadcast %30 : vector<8x1xf32> to vector<8x8xf32>
    %32 = arith.addf %28, %31 : vector<8x8xf32>
    %c0_18 = arith.constant 0 : index
    %c0_19 = arith.constant 0 : index
    %33 = vector.load %arg9[%c0_18, %c0_19] : memref<8x32xf32, #tpu.memory_space<vmem>>, vector<8x8xf32>
    tpu.vector_store %arg9[%c0_18, %c0_19], %32 {strides = array<i32>} : memref<8x32xf32, #tpu.memory_space<vmem>>, vector<8x8xf32>,
    %c0_20 = arith.constant 0 : index
    %c0_21 = arith.constant 0 : index
    %34 = vector.load %arg10[%c0_20, %c0_21] : memref<8x32xf32, #tpu.memory_space<vmem>>, vector<8x8xf32>
    %35 = arith.mulf %22, %34 : vector<8x8xf32>
    %36 = arith.truncf %26 : vector<8x8xf32> to vector<8x8xbf16>
    %37 = vector.extract_strided_slice %8 {offsets = [0, 0], sizes = [8, 8], strides = [1, 1]} : vector<8x32xbf16> to vector<8x8xbf16>
    %cst_22 = arith.constant dense<0.000000e+00> : vector<8x8xf32>
    %38 = tpu.matmul %36, %37, %cst_22 {dimension_numbers = #tpu.dot_dimension_numbers<[1], [0], [0], [1], [0, 0, 1, 1], [], []>} : vector<8x8xbf16>, vector<8x8xbf16>, vector<8x8xf32> -> vector<8x8xf32>
    %39 = arith.addf %35, %38 : vector<8x8xf32>
    %c0_23 = arith.constant 0 : index
    %c0_24 = arith.constant 0 : index
    %40 = vector.load %arg10[%c0_23, %c0_24] : memref<8x32xf32, #tpu.memory_space<vmem>>, vector<8x8xf32>
    tpu.vector_store %arg10[%c0_23, %c0_24], %39 {strides = array<i32>} : memref<8x32xf32, #tpu.memory_space<vmem>>, vector<8x8xf32>,
    %c0_25 = arith.constant 0 : index
    %c0_26 = arith.constant 0 : index
    %41 = vector.load %arg8[%c0_25, %c0_26] : memref<8x32xf32, #tpu.memory_space<vmem>>, vector<8x8xf32>
    tpu.vector_store %arg8[%c0_25, %c0_26], %20 {strides = array<i32>} : memref<8x32xf32, #tpu.memory_space<vmem>>, vector<8x8xf32>,
    %42 = vector.extract_strided_slice %4 {offsets = [0, 8], sizes = [8, 8], strides = [1, 1]} : vector<8x32xbf16> to vector<8x8xbf16>
    %43 = vector.extract_strided_slice %6 {offsets = [0, 8], sizes = [8, 8], strides = [1, 1]} : vector<8x32xbf16> to vector<8x8xbf16>
    %cst_27 = arith.constant dense<0.000000e+00> : vector<8x8xf32>
    %44 = tpu.matmul %42, %43, %cst_27 {dimension_numbers = #tpu.dot_dimension_numbers<[1], [1], [0], [0], [0, 0, 1, 0], [], []>} : vector<8x8xbf16>, vector<8x8xbf16>, vector<8x8xf32> -> vector<8x8xf32>
    %45 = vector.broadcast %10 : vector<1x8xf32> to vector<8x8xf32>
    %46 = arith.addf %44, %45 : vector<8x8xf32>
    %c0_28 = arith.constant 0 : index
    %c8 = arith.constant 8 : index
    %47 = vector.load %arg8[%c0_28, %c8] : memref<8x32xf32, #tpu.memory_space<vmem>>, vector<8x8xf32>
    %cst_29 = arith.constant dense<0xFF800000> : vector<8xf32>
    %48 = vector.multi_reduction <maximumf>, %46, %cst_29 [1] : vector<8x8xf32> to vector<8xf32>
    %49 = vector.shape_cast %48 : vector<8xf32> to vector<8x1xf32>
    %50 = vector.broadcast %49 : vector<8x1xf32> to vector<8x8xf32>
    %51 = arith.maximumf %47, %50 : vector<8x8xf32>
    %52 = arith.subf %47, %51 : vector<8x8xf32>
    %53 = math.exp %52 : vector<8x8xf32>
    %54 = vector.extract_strided_slice %51 {offsets = [0, 0], sizes = [8, 1], strides = [1, 1]} : vector<8x8xf32> to vector<8x1xf32>
    %55 = vector.broadcast %54 : vector<8x1xf32> to vector<8x8xf32>
    %56 = arith.subf %46, %55 : vector<8x8xf32>
    %57 = math.exp %56 : vector<8x8xf32>
    %c0_30 = arith.constant 0 : index
    %c8_31 = arith.constant 8 : index
    %58 = vector.load %arg9[%c0_30, %c8_31] : memref<8x32xf32, #tpu.memory_space<vmem>>, vector<8x8xf32>
    %59 = arith.mulf %53, %58 : vector<8x8xf32>
    %cst_32 = arith.constant dense<0.000000e+00> : vector<8xf32>
    %60 = vector.multi_reduction <add>, %57, %cst_32 [1] : vector<8x8xf32> to vector<8xf32>
    %61 = vector.shape_cast %60 : vector<8xf32> to vector<8x1xf32>
    %62 = vector.broadcast %61 : vector<8x1xf32> to vector<8x8xf32>
    %63 = arith.addf %59, %62 : vector<8x8xf32>
    %c0_33 = arith.constant 0 : index
    %c8_34 = arith.constant 8 : index
    %64 = vector.load %arg9[%c0_33, %c8_34] : memref<8x32xf32, #tpu.memory_space<vmem>>, vector<8x8xf32>
    tpu.vector_store %arg9[%c0_33, %c8_34], %63 {strides = array<i32>} : memref<8x32xf32, #tpu.memory_space<vmem>>, vector<8x8xf32>,
    %c0_35 = arith.constant 0 : index
    %c8_36 = arith.constant 8 : index
    %65 = vector.load %arg10[%c0_35, %c8_36] : memref<8x32xf32, #tpu.memory_space<vmem>>, vector<8x8xf32>
    %66 = arith.mulf %53, %65 : vector<8x8xf32>
    %67 = arith.truncf %57 : vector<8x8xf32> to vector<8x8xbf16>
    %68 = vector.extract_strided_slice %8 {offsets = [0, 8], sizes = [8, 8], strides = [1, 1]} : vector<8x32xbf16> to vector<8x8xbf16>
    %cst_37 = arith.constant dense<0.000000e+00> : vector<8x8xf32>
    %69 = tpu.matmul %67, %68, %cst_37 {dimension_numbers = #tpu.dot_dimension_numbers<[1], [0], [0], [1], [0, 0, 1, 1], [], []>} : vector<8x8xbf16>, vector<8x8xbf16>, vector<8x8xf32> -> vector<8x8xf32>
    %70 = arith.addf %66, %69 : vector<8x8xf32>
    %c0_38 = arith.constant 0 : index
    %c8_39 = arith.constant 8 : index
    %71 = vector.load %arg10[%c0_38, %c8_39] : memref<8x32xf32, #tpu.memory_space<vmem>>, vector<8x8xf32>
    tpu.vector_store %arg10[%c0_38, %c8_39], %70 {strides = array<i32>} : memref<8x32xf32, #tpu.memory_space<vmem>>, vector<8x8xf32>,
    %c0_40 = arith.constant 0 : index
    %c8_41 = arith.constant 8 : index
    %72 = vector.load %arg8[%c0_40, %c8_41] : memref<8x32xf32, #tpu.memory_space<vmem>>, vector<8x8xf32>
    tpu.vector_store %arg8[%c0_40, %c8_41], %51 {strides = array<i32>} : memref<8x32xf32, #tpu.memory_space<vmem>>, vector<8x8xf32>,
    %73 = vector.extract_strided_slice %4 {offsets = [0, 16], sizes = [8, 8], strides = [1, 1]} : vector<8x32xbf16> to vector<8x8xbf16>
    %74 = vector.extract_strided_slice %6 {offsets = [0, 16], sizes = [8, 8], strides = [1, 1]} : vector<8x32xbf16> to vector<8x8xbf16>
    %cst_42 = arith.constant dense<0.000000e+00> : vector<8x8xf32>
    %75 = tpu.matmul %73, %74, %cst_42 {dimension_numbers = #tpu.dot_dimension_numbers<[1], [1], [0], [0], [0, 0, 1, 0], [], []>} : vector<8x8xbf16>, vector<8x8xbf16>, vector<8x8xf32> -> vector<8x8xf32>
    %76 = vector.broadcast %10 : vector<1x8xf32> to vector<8x8xf32>
    %77 = arith.addf %75, %76 : vector<8x8xf32>
    %c0_43 = arith.constant 0 : index
    %c16 = arith.constant 16 : index
    %78 = vector.load %arg8[%c0_43, %c16] : memref<8x32xf32, #tpu.memory_space<vmem>>, vector<8x8xf32>
    %cst_44 = arith.constant dense<0xFF800000> : vector<8xf32>
    %79 = vector.multi_reduction <maximumf>, %77, %cst_44 [1] : vector<8x8xf32> to vector<8xf32>
    %80 = vector.shape_cast %79 : vector<8xf32> to vector<8x1xf32>
    %81 = vector.broadcast %80 : vector<8x1xf32> to vector<8x8xf32>
    %82 = arith.maximumf %78, %81 : vector<8x8xf32>
    %83 = arith.subf %78, %82 : vector<8x8xf32>
    %84 = math.exp %83 : vector<8x8xf32>
    %85 = vector.extract_strided_slice %82 {offsets = [0, 0], sizes = [8, 1], strides = [1, 1]} : vector<8x8xf32> to vector<8x1xf32>
    %86 = vector.broadcast %85 : vector<8x1xf32> to vector<8x8xf32>
    %87 = arith.subf %77, %86 : vector<8x8xf32>
    %88 = math.exp %87 : vector<8x8xf32>
    %c0_45 = arith.constant 0 : index
    %c16_46 = arith.constant 16 : index
    %89 = vector.load %arg9[%c0_45, %c16_46] : memref<8x32xf32, #tpu.memory_space<vmem>>, vector<8x8xf32>
    %90 = arith.mulf %84, %89 : vector<8x8xf32>
    %cst_47 = arith.constant dense<0.000000e+00> : vector<8xf32>
    %91 = vector.multi_reduction <add>, %88, %cst_47 [1] : vector<8x8xf32> to vector<8xf32>
    %92 = vector.shape_cast %91 : vector<8xf32> to vector<8x1xf32>
    %93 = vector.broadcast %92 : vector<8x1xf32> to vector<8x8xf32>
    %94 = arith.addf %90, %93 : vector<8x8xf32>
    %c0_48 = arith.constant 0 : index
    %c16_49 = arith.constant 16 : index
    %95 = vector.load %arg9[%c0_48, %c16_49] : memref<8x32xf32, #tpu.memory_space<vmem>>, vector<8x8xf32>
    tpu.vector_store %arg9[%c0_48, %c16_49], %94 {strides = array<i32>} : memref<8x32xf32, #tpu.memory_space<vmem>>, vector<8x8xf32>,
    %c0_50 = arith.constant 0 : index
    %c16_51 = arith.constant 16 : index
    %96 = vector.load %arg10[%c0_50, %c16_51] : memref<8x32xf32, #tpu.memory_space<vmem>>, vector<8x8xf32>
    %97 = arith.mulf %84, %96 : vector<8x8xf32>
    %98 = arith.truncf %88 : vector<8x8xf32> to vector<8x8xbf16>
    %99 = vector.extract_strided_slice %8 {offsets = [0, 16], sizes = [8, 8], strides = [1, 1]} : vector<8x32xbf16> to vector<8x8xbf16>
    %cst_52 = arith.constant dense<0.000000e+00> : vector<8x8xf32>
    %100 = tpu.matmul %98, %99, %cst_52 {dimension_numbers = #tpu.dot_dimension_numbers<[1], [0], [0], [1], [0, 0, 1, 1], [], []>} : vector<8x8xbf16>, vector<8x8xbf16>, vector<8x8xf32> -> vector<8x8xf32>
    %101 = arith.addf %97, %100 : vector<8x8xf32>
    %c0_53 = arith.constant 0 : index
    %c16_54 = arith.constant 16 : index
    %102 = vector.load %arg10[%c0_53, %c16_54] : memref<8x32xf32, #tpu.memory_space<vmem>>, vector<8x8xf32>
    tpu.vector_store %arg10[%c0_53, %c16_54], %101 {strides = array<i32>} : memref<8x32xf32, #tpu.memory_space<vmem>>, vector<8x8xf32>,
    %c0_55 = arith.constant 0 : index
    %c16_56 = arith.constant 16 : index
    %103 = vector.load %arg8[%c0_55, %c16_56] : memref<8x32xf32, #tpu.memory_space<vmem>>, vector<8x8xf32>
    tpu.vector_store %arg8[%c0_55, %c16_56], %82 {strides = array<i32>} : memref<8x32xf32, #tpu.memory_space<vmem>>, vector<8x8xf32>,
    %104 = vector.extract_strided_slice %4 {offsets = [0, 24], sizes = [8, 8], strides = [1, 1]} : vector<8x32xbf16> to vector<8x8xbf16>
    %105 = vector.extract_strided_slice %6 {offsets = [0, 24], sizes = [8, 8], strides = [1, 1]} : vector<8x32xbf16> to vector<8x8xbf16>
    %cst_57 = arith.constant dense<0.000000e+00> : vector<8x8xf32>
    %106 = tpu.matmul %104, %105, %cst_57 {dimension_numbers = #tpu.dot_dimension_numbers<[1], [1], [0], [0], [0, 0, 1, 0], [], []>} : vector<8x8xbf16>, vector<8x8xbf16>, vector<8x8xf32> -> vector<8x8xf32>
    %107 = vector.broadcast %10 : vector<1x8xf32> to vector<8x8xf32>
    %108 = arith.addf %106, %107 : vector<8x8xf32>
    %c0_58 = arith.constant 0 : index
    %c24 = arith.constant 24 : index
    %109 = vector.load %arg8[%c0_58, %c24] : memref<8x32xf32, #tpu.memory_space<vmem>>, vector<8x8xf32>
    %cst_59 = arith.constant dense<0xFF800000> : vector<8xf32>
    %110 = vector.multi_reduction <maximumf>, %108, %cst_59 [1] : vector<8x8xf32> to vector<8xf32>
    %111 = vector.shape_cast %110 : vector<8xf32> to vector<8x1xf32>
    %112 = vector.broadcast %111 : vector<8x1xf32> to vector<8x8xf32>
    %113 = arith.maximumf %109, %112 : vector<8x8xf32>
    %114 = arith.subf %109, %113 : vector<8x8xf32>
    %115 = math.exp %114 : vector<8x8xf32>
    %116 = vector.extract_strided_slice %113 {offsets = [0, 0], sizes = [8, 1], strides = [1, 1]} : vector<8x8xf32> to vector<8x1xf32>
    %117 = vector.broadcast %116 : vector<8x1xf32> to vector<8x8xf32>
    %118 = arith.subf %108, %117 : vector<8x8xf32>
    %119 = math.exp %118 : vector<8x8xf32>
    %c0_60 = arith.constant 0 : index
    %c24_61 = arith.constant 24 : index
    %120 = vector.load %arg9[%c0_60, %c24_61] : memref<8x32xf32, #tpu.memory_space<vmem>>, vector<8x8xf32>
    %121 = arith.mulf %115, %120 : vector<8x8xf32>
    %cst_62 = arith.constant dense<0.000000e+00> : vector<8xf32>
    %122 = vector.multi_reduction <add>, %119, %cst_62 [1] : vector<8x8xf32> to vector<8xf32>
    %123 = vector.shape_cast %122 : vector<8xf32> to vector<8x1xf32>
    %124 = vector.broadcast %123 : vector<8x1xf32> to vector<8x8xf32>
    %125 = arith.addf %121, %124 : vector<8x8xf32>
    %c0_63 = arith.constant 0 : index
    %c24_64 = arith.constant 24 : index
    %126 = vector.load %arg9[%c0_63, %c24_64] : memref<8x32xf32, #tpu.memory_space<vmem>>, vector<8x8xf32>
    tpu.vector_store %arg9[%c0_63, %c24_64], %125 {strides = array<i32>} : memref<8x32xf32, #tpu.memory_space<vmem>>, vector<8x8xf32>,
    %c0_65 = arith.constant 0 : index
    %c24_66 = arith.constant 24 : index
    %127 = vector.load %arg10[%c0_65, %c24_66] : memref<8x32xf32, #tpu.memory_space<vmem>>, vector<8x8xf32>
    %128 = arith.mulf %115, %127 : vector<8x8xf32>
    %129 = arith.truncf %119 : vector<8x8xf32> to vector<8x8xbf16>
    %130 = vector.extract_strided_slice %8 {offsets = [0, 24], sizes = [8, 8], strides = [1, 1]} : vector<8x32xbf16> to vector<8x8xbf16>
    %cst_67 = arith.constant dense<0.000000e+00> : vector<8x8xf32>
    %131 = tpu.matmul %129, %130, %cst_67 {dimension_numbers = #tpu.dot_dimension_numbers<[1], [0], [0], [1], [0, 0, 1, 1], [], []>} : vector<8x8xbf16>, vector<8x8xbf16>, vector<8x8xf32> -> vector<8x8xf32>
    %132 = arith.addf %128, %131 : vector<8x8xf32>
    %c0_68 = arith.constant 0 : index
    %c24_69 = arith.constant 24 : index
    %133 = vector.load %arg10[%c0_68, %c24_69] : memref<8x32xf32, #tpu.memory_space<vmem>>, vector<8x8xf32>
    tpu.vector_store %arg10[%c0_68, %c24_69], %132 {strides = array<i32>} : memref<8x32xf32, #tpu.memory_space<vmem>>, vector<8x8xf32>,
    %c0_70 = arith.constant 0 : index
    %c24_71 = arith.constant 24 : index
    %134 = vector.load %arg8[%c0_70, %c24_71] : memref<8x32xf32, #tpu.memory_space<vmem>>, vector<8x8xf32>
    tpu.vector_store %arg8[%c0_70, %c24_71], %113 {strides = array<i32>} : memref<8x32xf32, #tpu.memory_space<vmem>>, vector<8x8xf32>,
    %c0_i32_72 = arith.constant 0 : i32
    %135 = arith.cmpi eq, %arg2, %c0_i32_72 : i32
    %136 = arith.extui %135 : i1 to i32
    %c0_i32_73 = arith.constant 0 : i32
    %137 = arith.cmpi ne, %136, %c0_i32_73 : i32
    scf.if %137 {
      %c0_74 = arith.constant 0 : index
      %c0_75 = arith.constant 0 : index
      %138 = vector.load %arg10[%c0_74, %c0_75] : memref<8x32xf32, #tpu.memory_space<vmem>>, vector<8x32xf32>
      %c0_76 = arith.constant 0 : index
      %c0_77 = arith.constant 0 : index
      %139 = vector.load %arg9[%c0_76, %c0_77] : memref<8x32xf32, #tpu.memory_space<vmem>>, vector<8x32xf32>
      %140 = tpu.reciprocal %139 {approx = true} : vector<8x32xf32> -> vector<8x32xf32>
      %141 = arith.mulf %138, %140 : vector<8x32xf32>
      %142 = arith.truncf %141 : vector<8x32xf32> to vector<8x32xbf16>
      %c0_78 = arith.constant 0 : index
      %c0_79 = arith.constant 0 : index
      %c0_80 = arith.constant 0 : index
      %143 = vector.load %arg7[%c0_78, %c0_79, %c0_80] : memref<1x8x32xbf16, #tpu.memory_space<vmem>>, vector<1x8x32xbf16>
      %144 = vector.shape_cast %143 : vector<1x8x32xbf16> to vector<8x32xbf16>
      %145 = vector.shape_cast %142 : vector<8x32xbf16> to vector<1x8x32xbf16>
      tpu.vector_store %arg7[%c0_78, %c0_79, %c0_80], %145 {strides = array<i32>} : memref<1x8x32xbf16, #tpu.memory_space<vmem>>, vector<1x8x32xbf16>,
    } else {
    }
    return
  }
  func.func @transform_0(%arg0: i32, %arg1: i32, %arg2: i32) -> (i32, i32, i32) {
    %c0_i32 = arith.constant 0 : i32
    %c0_i32_0 = arith.constant 0 : i32
    return %arg0, %arg1, %c0_i32 : i32, i32, i32
  }
  func.func @transform_1(%arg0: i32, %arg1: i32, %arg2: i32) -> (i32, i32, i32) {
    %c0_i32 = arith.constant 0 : i32
    %c0_i32_0 = arith.constant 0 : i32
    return %arg0, %arg2, %c0_i32 : i32, i32, i32
  }
  func.func @transform_2(%arg0: i32, %arg1: i32, %arg2: i32) -> (i32, i32, i32) {
    %c0_i32 = arith.constant 0 : i32
    %c0_i32_0 = arith.constant 0 : i32
    return %arg0, %arg2, %c0_i32 : i32, i32, i32
  }
  func.func @transform_3(%arg0: i32, %arg1: i32, %arg2: i32) -> (i32, i32, i32) {
    %c0_i32 = arith.constant 0 : i32
    %c0_i32_0 = arith.constant 0 : i32
    return %arg0, %c0_i32, %arg2 : i32, i32, i32
  }
  func.func @transform_4(%arg0: i32, %arg1: i32, %arg2: i32) -> (i32, i32, i32) {
    %c0_i32 = arith.constant 0 : i32
    %c0_i32_0 = arith.constant 0 : i32
    return %arg0, %arg1, %c0_i32 : i32, i32, i32
  }
}

module attributes {stable_mosaic.version = 11 : i64} {
  func.func @_linear_full_kernel(%arg0: i32, %arg1: i32, %arg2: memref<16x32xbf16, #tpu.memory_space<vmem>>, %arg3: memref<32x64xbf16, #tpu.memory_space<vmem>>, %arg4: memref<1x64xf32, #tpu.memory_space<vmem>>, %arg5: memref<16x64xbf16, #tpu.memory_space<vmem>>) attributes {dimension_semantics = [#tpu.dimension_semantics<parallel>, #tpu.dimension_semantics<parallel>], iteration_bounds = array<i64: 1, 1>, scalar_prefetch = 0 : i64, scratch_operands = 0 : i64, tpu.core_type = #tpu.core_type<tc>, window_params = [{transform_indices = @transform_0, window_bounds = array<i64: 16, 32>}, {transform_indices = @transform_1, window_bounds = array<i64: 32, 64>}, {transform_indices = @transform_2, window_bounds = array<i64: 1, 64>}, {transform_indices = @transform_3, window_bounds = array<i64: 16, 64>}]} {
    %c0 = arith.constant 0 : index
    %c0_0 = arith.constant 0 : index
    %0 = vector.load %arg2[%c0, %c0_0] : memref<16x32xbf16, #tpu.memory_space<vmem>>, vector<16x32xbf16>
    %c0_1 = arith.constant 0 : index
    %c0_2 = arith.constant 0 : index
    %1 = vector.load %arg3[%c0_1, %c0_2] : memref<32x64xbf16, #tpu.memory_space<vmem>>, vector<32x64xbf16>
    %cst = arith.constant dense<0.000000e+00> : vector<16x64xf32>
    %2 = tpu.matmul %0, %1, %cst {dimension_numbers = #tpu.dot_dimension_numbers<[1], [0], [0], [1], [0, 0, 1, 1], [], []>} : vector<16x32xbf16>, vector<32x64xbf16>, vector<16x64xf32> -> vector<16x64xf32>
    %c0_3 = arith.constant 0 : index
    %c0_4 = arith.constant 0 : index
    %3 = vector.load %arg4[%c0_3, %c0_4] : memref<1x64xf32, #tpu.memory_space<vmem>>, vector<1x64xf32>
    %4 = vector.broadcast %3 : vector<1x64xf32> to vector<16x64xf32>
    %5 = arith.addf %2, %4 : vector<16x64xf32>
    %6 = arith.mulf %5, %5 : vector<16x64xf32>
    %7 = arith.mulf %5, %6 : vector<16x64xf32>
    %cst_5 = arith.constant 4.471500e-02 : f32
    %8 = vector.broadcast %cst_5 : f32 to vector<16x64xf32>
    %9 = arith.mulf %8, %7 : vector<16x64xf32>
    %10 = arith.addf %5, %9 : vector<16x64xf32>
    %cst_6 = arith.constant 0.797884583 : f32
    %11 = vector.broadcast %cst_6 : f32 to vector<16x64xf32>
    %12 = arith.mulf %11, %10 : vector<16x64xf32>
    %13 = math.tanh %12 : vector<16x64xf32>
    %cst_7 = arith.constant 1.000000e+00 : f32
    %14 = vector.broadcast %cst_7 : f32 to vector<16x64xf32>
    %15 = arith.addf %14, %13 : vector<16x64xf32>
    %cst_8 = arith.constant 5.000000e-01 : f32
    %16 = vector.broadcast %cst_8 : f32 to vector<16x64xf32>
    %17 = arith.mulf %16, %15 : vector<16x64xf32>
    %18 = arith.mulf %5, %17 : vector<16x64xf32>
    %19 = arith.truncf %18 : vector<16x64xf32> to vector<16x64xbf16>
    %c0_9 = arith.constant 0 : index
    %c0_10 = arith.constant 0 : index
    %20 = vector.load %arg5[%c0_9, %c0_10] : memref<16x64xbf16, #tpu.memory_space<vmem>>, vector<16x64xbf16>
    tpu.vector_store %arg5[%c0_9, %c0_10], %19 {strides = array<i32>} : memref<16x64xbf16, #tpu.memory_space<vmem>>, vector<16x64xbf16>,
    return
  }
  func.func @transform_0(%arg0: i32, %arg1: i32) -> (i32, i32) {
    %c0_i32 = arith.constant 0 : i32
    %c0_i32_0 = arith.constant 0 : i32
    return %arg0, %c0_i32 : i32, i32
  }
  func.func @transform_1(%arg0: i32, %arg1: i32) -> (i32, i32) {
    %c0_i32 = arith.constant 0 : i32
    %c0_i32_0 = arith.constant 0 : i32
    return %c0_i32, %arg1 : i32, i32
  }
  func.func @transform_2(%arg0: i32, %arg1: i32) -> (i32, i32) {
    %c0_i32 = arith.constant 0 : i32
    %c0_i32_0 = arith.constant 0 : i32
    return %c0_i32, %arg1 : i32, i32
  }
  func.func @transform_3(%arg0: i32, %arg1: i32) -> (i32, i32) {
    %c0_i32 = arith.constant 0 : i32
    return %arg0, %arg1 : i32, i32
  }
}

module attributes {stable_mosaic.version = 11 : i64} {
  func.func @_linear_full_kernel(%arg0: i32, %arg1: i32, %arg2: memref<2x32xbf16, #tpu.memory_space<vmem>>, %arg3: memref<32x32xbf16, #tpu.memory_space<vmem>>, %arg4: memref<1x32xf32, #tpu.memory_space<vmem>>, %arg5: memref<2x32xbf16, #tpu.memory_space<vmem>>) attributes {dimension_semantics = [#tpu.dimension_semantics<parallel>, #tpu.dimension_semantics<parallel>], iteration_bounds = array<i64: 1, 1>, scalar_prefetch = 0 : i64, scratch_operands = 0 : i64, tpu.core_type = #tpu.core_type<tc>, window_params = [{transform_indices = @transform_0, window_bounds = array<i64: 2, 32>}, {transform_indices = @transform_1, window_bounds = array<i64: 32, 32>}, {transform_indices = @transform_2, window_bounds = array<i64: 1, 32>}, {transform_indices = @transform_3, window_bounds = array<i64: 2, 32>}]} {
    %c0 = arith.constant 0 : index
    %c0_0 = arith.constant 0 : index
    %0 = vector.load %arg2[%c0, %c0_0] : memref<2x32xbf16, #tpu.memory_space<vmem>>, vector<2x32xbf16>
    %c0_1 = arith.constant 0 : index
    %c0_2 = arith.constant 0 : index
    %1 = vector.load %arg3[%c0_1, %c0_2] : memref<32x32xbf16, #tpu.memory_space<vmem>>, vector<32x32xbf16>
    %cst = arith.constant dense<0.000000e+00> : vector<2x32xf32>
    %2 = tpu.matmul %0, %1, %cst {dimension_numbers = #tpu.dot_dimension_numbers<[1], [0], [0], [1], [0, 0, 1, 1], [], []>} : vector<2x32xbf16>, vector<32x32xbf16>, vector<2x32xf32> -> vector<2x32xf32>
    %c0_3 = arith.constant 0 : index
    %c0_4 = arith.constant 0 : index
    %3 = vector.load %arg4[%c0_3, %c0_4] : memref<1x32xf32, #tpu.memory_space<vmem>>, vector<1x32xf32>
    %4 = vector.broadcast %3 : vector<1x32xf32> to vector<2x32xf32>
    %5 = arith.addf %2, %4 : vector<2x32xf32>
    %6 = math.tanh %5 : vector<2x32xf32>
    %7 = arith.truncf %6 : vector<2x32xf32> to vector<2x32xbf16>
    %c0_5 = arith.constant 0 : index
    %c0_6 = arith.constant 0 : index
    %8 = vector.load %arg5[%c0_5, %c0_6] : memref<2x32xbf16, #tpu.memory_space<vmem>>, vector<2x32xbf16>
    tpu.vector_store %arg5[%c0_5, %c0_6], %7 {strides = array<i32>} : memref<2x32xbf16, #tpu.memory_space<vmem>>, vector<2x32xbf16>,
    return
  }
  func.func @transform_0(%arg0: i32, %arg1: i32) -> (i32, i32) {
    %c0_i32 = arith.constant 0 : i32
    %c0_i32_0 = arith.constant 0 : i32
    return %arg0, %c0_i32 : i32, i32
  }
  func.func @transform_1(%arg0: i32, %arg1: i32) -> (i32, i32) {
    %c0_i32 = arith.constant 0 : i32
    %c0_i32_0 = arith.constant 0 : i32
    return %c0_i32, %arg1 : i32, i32
  }
  func.func @transform_2(%arg0: i32, %arg1: i32) -> (i32, i32) {
    %c0_i32 = arith.constant 0 : i32
    %c0_i32_0 = arith.constant 0 : i32
    return %c0_i32, %arg1 : i32, i32
  }
  func.func @transform_3(%arg0: i32, %arg1: i32) -> (i32, i32) {
    %c0_i32 = arith.constant 0 : i32
    return %arg0, %arg1 : i32, i32
  }
}

module attributes {stable_mosaic.version = 11 : i64} {
  func.func @_linear_res_ln_full_kernel(%arg0: i32, %arg1: memref<16x64xbf16, #tpu.memory_space<vmem>>, %arg2: memref<64x32xbf16, #tpu.memory_space<vmem>>, %arg3: memref<1x32xf32, #tpu.memory_space<vmem>>, %arg4: memref<16x32xbf16, #tpu.memory_space<vmem>>, %arg5: memref<1x32xf32, #tpu.memory_space<vmem>>, %arg6: memref<1x32xf32, #tpu.memory_space<vmem>>, %arg7: memref<16x32xbf16, #tpu.memory_space<vmem>>) attributes {dimension_semantics = [#tpu.dimension_semantics<parallel>], iteration_bounds = array<i64: 1>, scalar_prefetch = 0 : i64, scratch_operands = 0 : i64, tpu.core_type = #tpu.core_type<tc>, window_params = [{transform_indices = @transform_0, window_bounds = array<i64: 16, 64>}, {pipeline_mode = #tpu.pipeline_mode<synchronous>, transform_indices = @transform_1, window_bounds = array<i64: 64, 32>}, {pipeline_mode = #tpu.pipeline_mode<synchronous>, transform_indices = @transform_2, window_bounds = array<i64: 1, 32>}, {transform_indices = @transform_3, window_bounds = array<i64: 16, 32>}, {pipeline_mode = #tpu.pipeline_mode<synchronous>, transform_indices = @transform_4, window_bounds = array<i64: 1, 32>}, {pipeline_mode = #tpu.pipeline_mode<synchronous>, transform_indices = @transform_5, window_bounds = array<i64: 1, 32>}, {transform_indices = @transform_6, window_bounds = array<i64: 16, 32>}]} {
    %c0 = arith.constant 0 : index
    %c0_0 = arith.constant 0 : index
    %0 = vector.load %arg1[%c0, %c0_0] : memref<16x64xbf16, #tpu.memory_space<vmem>>, vector<16x64xbf16>
    %c0_1 = arith.constant 0 : index
    %c0_2 = arith.constant 0 : index
    %1 = vector.load %arg2[%c0_1, %c0_2] : memref<64x32xbf16, #tpu.memory_space<vmem>>, vector<64x32xbf16>
    %cst = arith.constant dense<0.000000e+00> : vector<16x32xf32>
    %2 = tpu.matmul %0, %1, %cst {dimension_numbers = #tpu.dot_dimension_numbers<[1], [0], [0], [1], [0, 0, 1, 1], [], []>} : vector<16x64xbf16>, vector<64x32xbf16>, vector<16x32xf32> -> vector<16x32xf32>
    %c0_3 = arith.constant 0 : index
    %c0_4 = arith.constant 0 : index
    %3 = vector.load %arg3[%c0_3, %c0_4] : memref<1x32xf32, #tpu.memory_space<vmem>>, vector<1x32xf32>
    %4 = vector.broadcast %3 : vector<1x32xf32> to vector<16x32xf32>
    %5 = arith.addf %2, %4 : vector<16x32xf32>
    %c0_5 = arith.constant 0 : index
    %c0_6 = arith.constant 0 : index
    %6 = vector.load %arg4[%c0_5, %c0_6] : memref<16x32xbf16, #tpu.memory_space<vmem>>, vector<16x32xbf16>
    %7 = arith.extf %6 : vector<16x32xbf16> to vector<16x32xf32>
    %8 = arith.addf %5, %7 : vector<16x32xf32>
    %cst_7 = arith.constant dense<0.000000e+00> : vector<16xf32>
    %9 = vector.multi_reduction <add>, %8, %cst_7 [1] : vector<16x32xf32> to vector<16xf32>
    %10 = vector.shape_cast %9 : vector<16xf32> to vector<16x1xf32>
    %cst_8 = arith.constant 3.200000e+01 : f32
    %11 = vector.broadcast %cst_8 : f32 to vector<16x1xf32>
    %12 = arith.divf %10, %11 : vector<16x1xf32>
    %13 = vector.broadcast %12 : vector<16x1xf32> to vector<16x32xf32>
    %14 = arith.subf %8, %13 : vector<16x32xf32>
    %15 = arith.mulf %14, %14 : vector<16x32xf32>
    %cst_9 = arith.constant dense<0.000000e+00> : vector<16xf32>
    %16 = vector.multi_reduction <add>, %15, %cst_9 [1] : vector<16x32xf32> to vector<16xf32>
    %17 = vector.shape_cast %16 : vector<16xf32> to vector<16x1xf32>
    %cst_10 = arith.constant 3.200000e+01 : f32
    %18 = vector.broadcast %cst_10 : f32 to vector<16x1xf32>
    %19 = arith.divf %17, %18 : vector<16x1xf32>
    %20 = vector.broadcast %12 : vector<16x1xf32> to vector<16x32xf32>
    %21 = arith.subf %8, %20 : vector<16x32xf32>
    %cst_11 = arith.constant 9.99999996E-13 : f32
    %22 = vector.broadcast %cst_11 : f32 to vector<16x1xf32>
    %23 = arith.addf %19, %22 : vector<16x1xf32>
    %24 = math.rsqrt %23 : vector<16x1xf32>
    %25 = vector.broadcast %24 : vector<16x1xf32> to vector<16x32xf32>
    %26 = arith.mulf %21, %25 : vector<16x32xf32>
    %c0_12 = arith.constant 0 : index
    %c0_13 = arith.constant 0 : index
    %27 = vector.load %arg5[%c0_12, %c0_13] : memref<1x32xf32, #tpu.memory_space<vmem>>, vector<1x32xf32>
    %28 = vector.broadcast %27 : vector<1x32xf32> to vector<16x32xf32>
    %29 = arith.mulf %26, %28 : vector<16x32xf32>
    %c0_14 = arith.constant 0 : index
    %c0_15 = arith.constant 0 : index
    %30 = vector.load %arg6[%c0_14, %c0_15] : memref<1x32xf32, #tpu.memory_space<vmem>>, vector<1x32xf32>
    %31 = vector.broadcast %30 : vector<1x32xf32> to vector<16x32xf32>
    %32 = arith.addf %29, %31 : vector<16x32xf32>
    %33 = arith.truncf %32 : vector<16x32xf32> to vector<16x32xbf16>
    %c0_16 = arith.constant 0 : index
    %c0_17 = arith.constant 0 : index
    %34 = vector.load %arg7[%c0_16, %c0_17] : memref<16x32xbf16, #tpu.memory_space<vmem>>, vector<16x32xbf16>
    tpu.vector_store %arg7[%c0_16, %c0_17], %33 {strides = array<i32>} : memref<16x32xbf16, #tpu.memory_space<vmem>>, vector<16x32xbf16>,
    return
  }
  func.func @transform_0(%arg0: i32) -> (i32, i32) {
    %c0_i32 = arith.constant 0 : i32
    %c0_i32_0 = arith.constant 0 : i32
    return %arg0, %c0_i32 : i32, i32
  }
  func.func @transform_1(%arg0: i32) -> (i32, i32) {
    %c0_i32 = arith.constant 0 : i32
    %c0_i32_0 = arith.constant 0 : i32
    %c0_i32_1 = arith.constant 0 : i32
    return %c0_i32, %c0_i32_0 : i32, i32
  }
  func.func @transform_2(%arg0: i32) -> (i32, i32) {
    %c0_i32 = arith.constant 0 : i32
    %c0_i32_0 = arith.constant 0 : i32
    %c0_i32_1 = arith.constant 0 : i32
    return %c0_i32, %c0_i32_0 : i32, i32
  }
  func.func @transform_3(%arg0: i32) -> (i32, i32) {
    %c0_i32 = arith.constant 0 : i32
    %c0_i32_0 = arith.constant 0 : i32
    return %arg0, %c0_i32 : i32, i32
  }
  func.func @transform_4(%arg0: i32) -> (i32, i32) {
    %c0_i32 = arith.constant 0 : i32
    %c0_i32_0 = arith.constant 0 : i32
    %c0_i32_1 = arith.constant 0 : i32
    return %c0_i32, %c0_i32_0 : i32, i32
  }
  func.func @transform_5(%arg0: i32) -> (i32, i32) {
    %c0_i32 = arith.constant 0 : i32
    %c0_i32_0 = arith.constant 0 : i32
    %c0_i32_1 = arith.constant 0 : i32
    return %c0_i32, %c0_i32_0 : i32, i32
  }
  func.func @transform_6(%arg0: i32) -> (i32, i32) {
    %c0_i32 = arith.constant 0 : i32
    %c0_i32_0 = arith.constant 0 : i32
    return %arg0, %c0_i32 : i32, i32
  }
}

module attributes {stable_mosaic.version = 11 : i64} {
  func.func @_linear_full_kernel(%arg0: i32, %arg1: i32, %arg2: memref<2x42xbf16, #tpu.memory_space<vmem>>, %arg3: memref<42x128xbf16, #tpu.memory_space<vmem>>, %arg4: memref<1x128xf32, #tpu.memory_space<vmem>>, %arg5: memref<2x128xf32, #tpu.memory_space<vmem>>) attributes {dimension_semantics = [#tpu.dimension_semantics<parallel>, #tpu.dimension_semantics<parallel>], iteration_bounds = array<i64: 1, 1>, scalar_prefetch = 0 : i64, scratch_operands = 0 : i64, tpu.core_type = #tpu.core_type<tc>, window_params = [{transform_indices = @transform_0, window_bounds = array<i64: 2, 42>}, {transform_indices = @transform_1, window_bounds = array<i64: 42, 128>}, {transform_indices = @transform_2, window_bounds = array<i64: 1, 128>}, {transform_indices = @transform_3, window_bounds = array<i64: 2, 128>}]} {
    %c0 = arith.constant 0 : index
    %c0_0 = arith.constant 0 : index
    %0 = vector.load %arg2[%c0, %c0_0] : memref<2x42xbf16, #tpu.memory_space<vmem>>, vector<2x42xbf16>
    %c0_1 = arith.constant 0 : index
    %c0_2 = arith.constant 0 : index
    %1 = vector.load %arg3[%c0_1, %c0_2] : memref<42x128xbf16, #tpu.memory_space<vmem>>, vector<42x128xbf16>
    %cst = arith.constant dense<0.000000e+00> : vector<2x128xf32>
    %2 = tpu.matmul %0, %1, %cst {dimension_numbers = #tpu.dot_dimension_numbers<[1], [0], [0], [1], [0, 0, 1, 1], [], []>} : vector<2x42xbf16>, vector<42x128xbf16>, vector<2x128xf32> -> vector<2x128xf32>
    %c0_3 = arith.constant 0 : index
    %c0_4 = arith.constant 0 : index
    %3 = vector.load %arg4[%c0_3, %c0_4] : memref<1x128xf32, #tpu.memory_space<vmem>>, vector<1x128xf32>
    %4 = vector.broadcast %3 : vector<1x128xf32> to vector<2x128xf32>
    %5 = arith.addf %2, %4 : vector<2x128xf32>
    %c0_5 = arith.constant 0 : index
    %c0_6 = arith.constant 0 : index
    %6 = vector.load %arg5[%c0_5, %c0_6] : memref<2x128xf32, #tpu.memory_space<vmem>>, vector<2x128xf32>
    tpu.vector_store %arg5[%c0_5, %c0_6], %5 {strides = array<i32>} : memref<2x128xf32, #tpu.memory_space<vmem>>, vector<2x128xf32>,
    return
  }
  func.func @transform_0(%arg0: i32, %arg1: i32) -> (i32, i32) {
    %c0_i32 = arith.constant 0 : i32
    %c0_i32_0 = arith.constant 0 : i32
    return %arg0, %c0_i32 : i32, i32
  }
  func.func @transform_1(%arg0: i32, %arg1: i32) -> (i32, i32) {
    %c0_i32 = arith.constant 0 : i32
    %c0_i32_0 = arith.constant 0 : i32
    return %c0_i32, %arg1 : i32, i32
  }
  func.func @transform_2(%arg0: i32, %arg1: i32) -> (i32, i32) {
    %c0_i32 = arith.constant 0 : i32
    %c0_i32_0 = arith.constant 0 : i32
    return %c0_i32, %arg1 : i32, i32
  }
  func.func @transform_3(%arg0: i32, %arg1: i32) -> (i32, i32) {
    %c0_i32 = arith.constant 0 : i32
    return %arg0, %arg1 : i32, i32
  }
}

module attributes {stable_mosaic.version = 11 : i64} {
  func.func @_linear_full_kernel(%arg0: i32, %arg1: i32, %arg2: memref<16x32xbf16, #tpu.memory_space<vmem>>, %arg3: memref<32x128xbf16, #tpu.memory_space<vmem>>, %arg4: memref<1x128xf32, #tpu.memory_space<vmem>>, %arg5: memref<16x128xf32, #tpu.memory_space<vmem>>) attributes {dimension_semantics = [#tpu.dimension_semantics<parallel>, #tpu.dimension_semantics<parallel>], iteration_bounds = array<i64: 1, 1>, scalar_prefetch = 0 : i64, scratch_operands = 0 : i64, tpu.core_type = #tpu.core_type<tc>, window_params = [{transform_indices = @transform_0, window_bounds = array<i64: 16, 32>}, {transform_indices = @transform_1, window_bounds = array<i64: 32, 128>}, {transform_indices = @transform_2, window_bounds = array<i64: 1, 128>}, {transform_indices = @transform_3, window_bounds = array<i64: 16, 128>}]} {
    %c0 = arith.constant 0 : index
    %c0_0 = arith.constant 0 : index
    %0 = vector.load %arg2[%c0, %c0_0] : memref<16x32xbf16, #tpu.memory_space<vmem>>, vector<16x32xbf16>
    %c0_1 = arith.constant 0 : index
    %c0_2 = arith.constant 0 : index
    %1 = vector.load %arg3[%c0_1, %c0_2] : memref<32x128xbf16, #tpu.memory_space<vmem>>, vector<32x128xbf16>
    %cst = arith.constant dense<0.000000e+00> : vector<16x128xf32>
    %2 = tpu.matmul %0, %1, %cst {dimension_numbers = #tpu.dot_dimension_numbers<[1], [0], [0], [1], [0, 0, 1, 1], [], []>} : vector<16x32xbf16>, vector<32x128xbf16>, vector<16x128xf32> -> vector<16x128xf32>
    %c0_3 = arith.constant 0 : index
    %c0_4 = arith.constant 0 : index
    %3 = vector.load %arg4[%c0_3, %c0_4] : memref<1x128xf32, #tpu.memory_space<vmem>>, vector<1x128xf32>
    %4 = vector.broadcast %3 : vector<1x128xf32> to vector<16x128xf32>
    %5 = arith.addf %2, %4 : vector<16x128xf32>
    %c0_5 = arith.constant 0 : index
    %c0_6 = arith.constant 0 : index
    %6 = vector.load %arg5[%c0_5, %c0_6] : memref<16x128xf32, #tpu.memory_space<vmem>>, vector<16x128xf32>
    tpu.vector_store %arg5[%c0_5, %c0_6], %5 {strides = array<i32>} : memref<16x128xf32, #tpu.memory_space<vmem>>, vector<16x128xf32>,
    return
  }
  func.func @transform_0(%arg0: i32, %arg1: i32) -> (i32, i32) {
    %c0_i32 = arith.constant 0 : i32
    %c0_i32_0 = arith.constant 0 : i32
    return %arg0, %c0_i32 : i32, i32
  }
  func.func @transform_1(%arg0: i32, %arg1: i32) -> (i32, i32) {
    %c0_i32 = arith.constant 0 : i32
    %c0_i32_0 = arith.constant 0 : i32
    return %c0_i32, %arg1 : i32, i32
  }
  func.func @transform_2(%arg0: i32, %arg1: i32) -> (i32, i32) {
    %c0_i32 = arith.constant 0 : i32
    %c0_i32_0 = arith.constant 0 : i32
    return %c0_i32, %arg1 : i32, i32
  }
  func.func @transform_3(%arg0: i32, %arg1: i32) -> (i32, i32) {
    %c0_i32 = arith.constant 0 : i32
    return %arg0, %arg1 : i32, i32
  }
}

</mosaic_0001>

<llo_original>
// kernel: trippy_forward.18
$region0: #{trippy_forward.18}
  #allocation0 [shape = 'u32[]', space=smem, size = 0x4, offset = 0x4, fixed_abs, tag = 'smem constant byte address 0x4 - core index']
  #allocation1 [shape = 'u32[72,128]{1,0:T(1,128)}', space=vmem, size = 0x9000, scoped, tag = 'internal scratch']
  %s0 = inlined_call_operand.vmem [shape: f32[16,32], index: 0, kind: input, shape index: {}]
  %s1 = inlined_call_operand.vmem [shape: f32[1,32], index: 1, kind: input, shape index: {}]
  %s2 = inlined_call_operand.vmem [shape: f32[1,32], index: 2, kind: input, shape index: {}]
  %s3 = inlined_call_operand.vmem [shape: bf16[16,32], index: 3, kind: output, shape index: {}]
  %s4 = sld [smem:[#allocation0]]
  $region22: #{trippy_forward.18} parent=0
    _
  %s6 = ssub.s32 1, %s4
  %s7 = scalar_select 0, %s6, %s4
  // Predicated region
  $region2: #{trippy_forward.18} parent=0 // pred_check
    _
  $region3: #{trippy_forward.18} parent=0 // pred_check_branch
    %9 = sbr.rel (0) target = $region5
  $region4: #{trippy_forward.18} parent=0 // pred_region
    _
  $region5: #{trippy_forward.18} parent=0 // pred_fallthru
    _
  // Predicated region
  $region6: #{trippy_forward.18} parent=0 // pred_check
    _
  $region7: #{trippy_forward.18} parent=0 // pred_check_branch
    %11 = sbr.rel (0) target = $region9
  $region8: #{trippy_forward.18} parent=0 // pred_region
    _
  $region9: #{trippy_forward.18} parent=0 // pred_fallthru
    _
  // Predicated region
  $region10: #{trippy_forward.18} parent=0 // pred_check
    _
  $region11: #{trippy_forward.18} parent=0 // pred_check_branch
    %13 = sbr.rel (0) target = $region13
  $region12: #{trippy_forward.18} parent=0 // pred_region
    _
  $region13: #{trippy_forward.18} parent=0 // pred_fallthru
    _
  %v14 = vld [vmem:[%s0] sm:$0xff]
  %v15 = vld [vmem:[%s0 + $0x8] sm:$0xff]
  %vm16 = vcmask 261120
  %v17 = vsel %vm16, %v14, 0.0
  %18 = vadd.xlane.f32.xlu0 %v17
  %v19 = vpop.xlane.xlu0 %18
  %v20 = vsel %vm16, %v15, 0.0
  %21 = vadd.xlane.f32.xlu0 %v20
  %v22 = vpop.xlane.xlu0 %21
  %v23 = vrcp.pop 32.0
  %v24 = vmul.f32 32.0, %v23
  %v25 = vsub.f32 1.0, %v24
  %v26 = vmul.f32 %v23, %v25
  %v27 = vadd.f32 %v23, %v26
  %vm28 = vweird.f32 %v23
  %v29 = vsel %vm28, %v23, %v27
  %v30 = vmul.f32 %v19, %v29
  %v31 = vmul.f32 %v22, %v29
  %v32 = vsub.f32 %v14, %v30
  %v33 = vsub.f32 %v15, %v31
  %v34 = vmul.f32 %v32, %v32
  %v35 = vmul.f32 %v33, %v33
  %v36 = vsel %vm16, %v34, 0.0
  %37 = vadd.xlane.f32.xlu0 %v36
  %v38 = vpop.xlane.xlu0 %37
  %v39 = vsel %vm16, %v35, 0.0
  %40 = vadd.xlane.f32.xlu0 %v39
  %v41 = vpop.xlane.xlu0 %40
  %v42 = vmul.f32 %v38, %v29
  %v43 = vmul.f32 %v41, %v29
  %v44 = vadd.f32 %v42, 1e-12
  %v45 = vadd.f32 %v43, 1e-12
  %v46 = vrsqrt.pop %v44
  %v47 = vmul.f32 %v46, %v44
  %v48 = vmul.f32 %v47, %v46
  %v49 = vmul.f32 0.5, %v48
  %v50 = vsub.f32 1.5, %v49
  %v51 = vmul.f32 %v46, %v50
  %vm52 = vweird.f32 %v44
  %vm53 = vweird.f32 %v46
  %vm54 = vmor %vm52, %vm53
  %v55 = vsel %vm54, %v46, %v51
  %v56 = vrsqrt.pop %v45
  %v57 = vmul.f32 %v56, %v45
  %v58 = vmul.f32 %v57, %v56
  %v59 = vmul.f32 0.5, %v58
  %v60 = vsub.f32 1.5, %v59
  %v61 = vmul.f32 %v56, %v60
  %vm62 = vweird.f32 %v45
  %vm63 = vweird.f32 %v56
  %vm64 = vmor %vm62, %vm63
  %v65 = vsel %vm64, %v56, %v61
  %v66 = vmul.f32 %v32, %v55
  %v67 = vmul.f32 %v33, %v65
  %v68 = vld [vmem:[%s1] sm:$0x1]
  %v70 = vperm.slane %v68, 0
  %v72 = vmul.f32 %v66, %v70
  %v73 = vmul.f32 %v67, %v70
  %v74 = vld [vmem:[%s2] sm:$0x1]
  %v76 = vperm.slane %v74, 0
  %v78 = vadd.f32 %v72, %v76
  %v79 = vadd.f32 %v73, %v76
  %v80 = vpack.c.bf16 %v78, %v78
  %v81 = vpack.c.bf16 %v79, %v79
  %vm82 = vcmask 257024
  %83 = vst.msk [vmem:[%s3] sm:$0xf] %vm82, %v80
  %84 = vst.msk [vmem:[%s3 + $0x4] sm:$0xf] %vm82, %v81
  // Predicated region
  $region14: #{trippy_forward.18} parent=0 // pred_check
    _
  $region15: #{trippy_forward.18} parent=0 // pred_check_branch
    %86 = sbr.rel (0) target = $region17
  $region16: #{trippy_forward.18} parent=0 // pred_region
    _
  $region17: #{trippy_forward.18} parent=0 // pred_fallthru
    _
  // Predicated region
  $region18: #{trippy_forward.18} parent=0 // pred_check
    _
  $region19: #{trippy_forward.18} parent=0 // pred_check_branch
    %88 = sbr.rel (0) target = $region21
  $region20: #{trippy_forward.18} parent=0 // pred_region
    _
  $region21: #{trippy_forward.18} parent=0 // pred_fallthru
    _

// kernel: trippy_forward.21
$region0: #{trippy_forward.21}
  #allocation0 [shape = 'u32[]', space=smem, size = 0x4, offset = 0x4, fixed_abs, tag = 'smem constant byte address 0x4 - core index']
  #allocation1 [shape = 'u32[72,128]{1,0:T(1,128)}', space=vmem, size = 0x9000, scoped, tag = 'internal scratch']
  %s0 = inlined_call_operand.vmem [shape: bf16[16,32], index: 0, kind: input, shape index: {}]
  %s1 = inlined_call_operand.vmem [shape: bf16[32,32], index: 1, kind: input, shape index: {}]
  %s2 = inlined_call_operand.vmem [shape: f32[1,32], index: 2, kind: input, shape index: {}]
  %s3 = inlined_call_operand.vmem [shape: bf16[16,32], index: 3, kind: output, shape index: {}]
  %s4 = sld [smem:[#allocation0]]
  $region22: #{trippy_forward.21} parent=0
    _
  %s6 = ssub.s32 1, %s4
  %s7 = scalar_select 0, %s6, %s4
  // Predicated region
  $region2: #{trippy_forward.21} parent=0 // pred_check
    _
  $region3: #{trippy_forward.21} parent=0 // pred_check_branch
    %9 = sbr.rel (0) target = $region5
  $region4: #{trippy_forward.21} parent=0 // pred_region
    _
  $region5: #{trippy_forward.21} parent=0 // pred_fallthru
    _
  // Predicated region
  $region6: #{trippy_forward.21} parent=0 // pred_check
    _
  $region7: #{trippy_forward.21} parent=0 // pred_check_branch
    %11 = sbr.rel (0) target = $region9
  $region8: #{trippy_forward.21} parent=0 // pred_region
    _
  $region9: #{trippy_forward.21} parent=0 // pred_fallthru
    _
  // Predicated region
  $region10: #{trippy_forward.21} parent=0 // pred_check
    _
  $region11: #{trippy_forward.21} parent=0 // pred_check_branch
    %13 = sbr.rel (0) target = $region13
  $region12: #{trippy_forward.21} parent=0 // pred_region
    _
  $region13: #{trippy_forward.21} parent=0 // pred_fallthru
    _
  %v15 = vld [vmem:[%s0] sm:$0xf]
  %v16 = vld [vmem:[%s0 + $0x4] sm:$0xf]
  %v17 = vld [vmem:[%s1] sm:$0xf]
  %v18 = vld [vmem:[%s1 + $0x4] sm:$0xf]
  %v19 = vld [vmem:[%s1 + $0x8] sm:$0xf]
  %v20 = vld [vmem:[%s1 + $0xc] sm:$0xf]
  %v21 = vld [vmem:[%s2] sm:$0x1]
  %v23 = vperm.slane %v21, 0
  %v27 = vunpack.c.l.b16 %v15
  %v28 = vunpack.c.l.b16 %v16
  %v29 = vpack.c.b16 %v28, %v27
  %v34 = vunpack.c.l.b16 %v17
  %v35 = vunpack.c.l.b16 %v18
  %v36 = vunpack.c.l.b16 %v19
  %v37 = vunpack.c.l.b16 %v20
  %v38 = vpack.c.b16 %v35, %v34
  %v39 = vpack.c.b16 %v37, %v36
  %vm42 = vcmask 261120
  %v44 = vsel %vm42, %v29, 0
  %46 = vmatpush.bf16.msra.mxu0 0
  %47 = vmatpush.bf16.msra.mxu0 0
  %48 = vmatpush.bf16.msra.mxu0 0
  %49 = vmatpush.bf16.msra.mxu0 0
  %50 = vmatpush.bf16.msra.mxu0 0
  %51 = vmatpush.bf16.msra.mxu0 0
  %52 = vmatpush.bf16.msra.mxu0 %v39
  %53 = vmatpush.bf16.msra.mxu0 %v38
  %54 = vmatmul.bf16.gmra.mxu0 %v44
  %v55 = vpop.f32.mrf.mxu0
  %v56 = vadd.f32 %v23, %v55
  %v57 = vpop.f32.mrf.mxu0
  %v58 = vadd.f32 %v23, %v57
  %59 = vdwg.mxu0
  %v60 = vpack.c.bf16 %v56, %v56
  %v61 = vpack.c.bf16 %v58, %v58
  %vm62 = vcmask 257024
  %63 = vst.msk [vmem:[%s3] sm:$0xf] %vm62, %v60
  %64 = vst.msk [vmem:[%s3 + $0x4] sm:$0xf] %vm62, %v61
  // Predicated region
  $region14: #{trippy_forward.21} parent=0 // pred_check
    _
  $region15: #{trippy_forward.21} parent=0 // pred_check_branch
    %66 = sbr.rel (0) target = $region17
  $region16: #{trippy_forward.21} parent=0 // pred_region
    _
  $region17: #{trippy_forward.21} parent=0 // pred_fallthru
    _
  // Predicated region
  $region18: #{trippy_forward.21} parent=0 // pred_check
    _
  $region19: #{trippy_forward.21} parent=0 // pred_check_branch
    %68 = sbr.rel (0) target = $region21
  $region20: #{trippy_forward.21} parent=0 // pred_region
    _
  $region21: #{trippy_forward.21} parent=0 // pred_fallthru
    _

// kernel: trippy_forward.23
$region0: #{trippy_forward.23}
  #allocation0 [shape = 'u32[]', space=smem, size = 0x4, offset = 0x4, fixed_abs, tag = 'smem constant byte address 0x4 - core index']
  #allocation1 [shape = 'u32[72,128]{1,0:T(1,128)}', space=vmem, size = 0x9000, scoped, tag = 'internal scratch']
  %s0 = inlined_call_operand.vmem [shape: bf16[16,32], index: 0, kind: input, shape index: {}]
  %s1 = inlined_call_operand.vmem [shape: bf16[32,32], index: 1, kind: input, shape index: {}]
  %s2 = inlined_call_operand.vmem [shape: f32[1,32], index: 2, kind: input, shape index: {}]
  %s3 = inlined_call_operand.vmem [shape: bf16[16,32], index: 3, kind: input, shape index: {}]
  %s4 = inlined_call_operand.vmem [shape: f32[1,32], index: 4, kind: input, shape index: {}]
  %s5 = inlined_call_operand.vmem [shape: f32[1,32], index: 5, kind: input, shape index: {}]
  %s6 = inlined_call_operand.vmem [shape: bf16[16,32], index: 6, kind: output, shape index: {}]
  %s7 = sld [smem:[#allocation0]]
  $region34: #{trippy_forward.23} parent=0
    _
  %s9 = ssub.s32 1, %s7
  %s10 = scalar_select 0, %s9, %s7
  // Predicated region
  $region2: #{trippy_forward.23} parent=0 // pred_check
    _
  $region3: #{trippy_forward.23} parent=0 // pred_check_branch
    %12 = sbr.rel (0) target = $region5
  $region4: #{trippy_forward.23} parent=0 // pred_region
    _
  $region5: #{trippy_forward.23} parent=0 // pred_fallthru
    _
  // Predicated region
  $region6: #{trippy_forward.23} parent=0 // pred_check
    _
  $region7: #{trippy_forward.23} parent=0 // pred_check_branch
    %14 = sbr.rel (0) target = $region9
  $region8: #{trippy_forward.23} parent=0 // pred_region
    _
  $region9: #{trippy_forward.23} parent=0 // pred_fallthru
    _
  // Predicated region
  $region10: #{trippy_forward.23} parent=0 // pred_check
    _
  $region11: #{trippy_forward.23} parent=0 // pred_check_branch
    %16 = sbr.rel (0) target = $region13
  $region12: #{trippy_forward.23} parent=0 // pred_region
    _
  $region13: #{trippy_forward.23} parent=0 // pred_fallthru
    _
  // Predicated region
  $region14: #{trippy_forward.23} parent=0 // pred_check
    _
  $region15: #{trippy_forward.23} parent=0 // pred_check_branch
    %18 = sbr.rel (0) target = $region17
  $region16: #{trippy_forward.23} parent=0 // pred_region
    _
  $region17: #{trippy_forward.23} parent=0 // pred_fallthru
    _
  // Predicated region
  $region18: #{trippy_forward.23} parent=0 // pred_check
    _
  $region19: #{trippy_forward.23} parent=0 // pred_check_branch
    %20 = sbr.rel (0) target = $region21
  $region20: #{trippy_forward.23} parent=0 // pred_region
    _
  $region21: #{trippy_forward.23} parent=0 // pred_fallthru
    _
  // Predicated region
  $region22: #{trippy_forward.23} parent=0 // pred_check
    _
  $region23: #{trippy_forward.23} parent=0 // pred_check_branch
    %22 = sbr.rel (0) target = $region25
  $region24: #{trippy_forward.23} parent=0 // pred_region
    _
  $region25: #{trippy_forward.23} parent=0 // pred_fallthru
    _
  %v24 = vld [vmem:[%s0] sm:$0xf]
  %v25 = vld [vmem:[%s0 + $0x4] sm:$0xf]
  %v26 = vld [vmem:[%s1] sm:$0xf]
  %v27 = vld [vmem:[%s1 + $0x4] sm:$0xf]
  %v28 = vld [vmem:[%s1 + $0x8] sm:$0xf]
  %v29 = vld [vmem:[%s1 + $0xc] sm:$0xf]
  %v30 = vld [vmem:[%s2] sm:$0x1]
  %v32 = vperm.slane %v30, 0
  %v36 = vunpack.c.l.b16 %v24
  %v37 = vunpack.c.l.b16 %v25
  %v38 = vpack.c.b16 %v37, %v36
  %v43 = vunpack.c.l.b16 %v26
  %v44 = vunpack.c.l.b16 %v27
  %v45 = vunpack.c.l.b16 %v28
  %v46 = vunpack.c.l.b16 %v29
  %v47 = vpack.c.b16 %v44, %v43
  %v48 = vpack.c.b16 %v46, %v45
  %vm51 = vcmask 261120
  %v53 = vsel %vm51, %v38, 0
  %55 = vmatpush.bf16.msra.mxu0 0
  %56 = vmatpush.bf16.msra.mxu0 0
  %57 = vmatpush.bf16.msra.mxu0 0
  %58 = vmatpush.bf16.msra.mxu0 0
  %59 = vmatpush.bf16.msra.mxu0 0
  %60 = vmatpush.bf16.msra.mxu0 0
  %61 = vmatpush.bf16.msra.mxu0 %v48
  %62 = vmatpush.bf16.msra.mxu0 %v47
  %63 = vmatmul.bf16.gmra.mxu0 %v53
  %v64 = vpop.f32.mrf.mxu0
  %v65 = vadd.f32 %v32, %v64
  %v66 = vpop.f32.mrf.mxu0
  %v67 = vadd.f32 %v32, %v66
  %68 = vdwg.mxu0
  %v69 = vld [vmem:[%s3] sm:$0xf]
  %v70 = vld [vmem:[%s3 + $0x4] sm:$0xf]
  %v71 = vunpack.c.l.bf16 %v69
  %v72 = vunpack.c.l.bf16 %v70
  %v73 = vadd.f32 %v65, %v71
  %v74 = vadd.f32 %v67, %v72
  %v75 = vsel %vm51, %v73, 0.0
  %76 = vadd.xlane.f32.xlu0 %v75
  %v77 = vpop.xlane.xlu0 %76
  %v78 = vsel %vm51, %v74, 0.0
  %79 = vadd.xlane.f32.xlu0 %v78
  %v80 = vpop.xlane.xlu0 %79
  %v81 = vrcp.pop 32.0
  %v82 = vmul.f32 32.0, %v81
  %v83 = vsub.f32 1.0, %v82
  %v84 = vmul.f32 %v81, %v83
  %v85 = vadd.f32 %v81, %v84
  %vm86 = vweird.f32 %v81
  %v87 = vsel %vm86, %v81, %v85
  %v88 = vmul.f32 %v77, %v87
  %v89 = vmul.f32 %v80, %v87
  %v90 = vsub.f32 %v73, %v88
  %v91 = vsub.f32 %v74, %v89
  %v92 = vmul.f32 %v90, %v90
  %v93 = vmul.f32 %v91, %v91
  %v94 = vsel %vm51, %v92, 0.0
  %95 = vadd.xlane.f32.xlu0 %v94
  %v96 = vpop.xlane.xlu0 %95
  %v97 = vsel %vm51, %v93, 0.0
  %98 = vadd.xlane.f32.xlu0 %v97
  %v99 = vpop.xlane.xlu0 %98
  %v100 = vmul.f32 %v96, %v87
  %v101 = vmul.f32 %v99, %v87
  %v102 = vadd.f32 %v100, 1e-12
  %v103 = vadd.f32 %v101, 1e-12
  %v104 = vrsqrt.pop %v102
  %v105 = vmul.f32 %v104, %v102
  %v106 = vmul.f32 %v105, %v104
  %v107 = vmul.f32 0.5, %v106
  %v108 = vsub.f32 1.5, %v107
  %v109 = vmul.f32 %v104, %v108
  %vm110 = vweird.f32 %v102
  %vm111 = vweird.f32 %v104
  %vm112 = vmor %vm110, %vm111
  %v113 = vsel %vm112, %v104, %v109
  %v114 = vrsqrt.pop %v103
  %v115 = vmul.f32 %v114, %v103
  %v116 = vmul.f32 %v115, %v114
  %v117 = vmul.f32 0.5, %v116
  %v118 = vsub.f32 1.5, %v117
  %v119 = vmul.f32 %v114, %v118
  %vm120 = vweird.f32 %v103
  %vm121 = vweird.f32 %v114
  %vm122 = vmor %vm120, %vm121
  %v123 = vsel %vm122, %v114, %v119
  %v124 = vmul.f32 %v90, %v113
  %v125 = vmul.f32 %v91, %v123
  %v126 = vld [vmem:[%s4] sm:$0x1]
  %v128 = vperm.slane %v126, 0
  %v130 = vmul.f32 %v124, %v128
  %v131 = vmul.f32 %v125, %v128
  %v132 = vld [vmem:[%s5] sm:$0x1]
  %v134 = vperm.slane %v132, 0
  %v136 = vadd.f32 %v130, %v134
  %v137 = vadd.f32 %v131, %v134
  %v138 = vpack.c.bf16 %v136, %v136
  %v139 = vpack.c.bf16 %v137, %v137
  %vm140 = vcmask 257024
  %141 = vst.msk [vmem:[%s6] sm:$0xf] %vm140, %v138
  %142 = vst.msk [vmem:[%s6 + $0x4] sm:$0xf] %vm140, %v139
  // Predicated region
  $region26: #{trippy_forward.23} parent=0 // pred_check
    _
  $region27: #{trippy_forward.23} parent=0 // pred_check_branch
    %144 = sbr.rel (0) target = $region29
  $region28: #{trippy_forward.23} parent=0 // pred_region
    _
  $region29: #{trippy_forward.23} parent=0 // pred_fallthru
    _
  // Predicated region
  $region30: #{trippy_forward.23} parent=0 // pred_check
    _
  $region31: #{trippy_forward.23} parent=0 // pred_check_branch
    %146 = sbr.rel (0) target = $region33
  $region32: #{trippy_forward.23} parent=0 // pred_region
    _
  $region33: #{trippy_forward.23} parent=0 // pred_fallthru
    _

// kernel: trippy_forward.22
$region0: #{trippy_forward.22}
  #allocation0 [shape = 'u32[]', space=smem, size = 0x4, offset = 0x4, fixed_abs, tag = 'smem constant byte address 0x4 - core index']
  #allocation1 [shape = 'u32[72,128]{1,0:T(1,128)}', space=vmem, size = 0x9000, scoped, tag = 'internal scratch']
  #allocation2 [shape = 'f32[8,32]{1,0:T(8,128)}', space=vmem, size = 0x1000, scoped, tag = 'scratch operand']
  #allocation3 [shape = 'f32[8,32]{1,0:T(8,128)}', space=vmem, size = 0x1000, scoped, tag = 'scratch operand']
  #allocation4 [shape = 'f32[8,32]{1,0:T(8,128)}', space=vmem, size = 0x1000, scoped, tag = 'scratch operand']
  %s0 = inlined_call_operand.vmem [shape: bf16[2,8,32], index: 0, kind: input, shape index: {}]
  %s1 = inlined_call_operand.vmem [shape: bf16[2,8,32], index: 1, kind: input, shape index: {}]
  %s2 = inlined_call_operand.vmem [shape: bf16[2,8,32], index: 2, kind: input, shape index: {}]
  %s3 = inlined_call_operand.vmem [shape: f32[2,1,8], index: 3, kind: input, shape index: {}]
  %s4 = inlined_call_operand.vmem [shape: bf16[2,8,32], index: 4, kind: output, shape index: {}]
  %s5 = sld [smem:[#allocation0]]
  $region57: #{trippy_forward.22} parent=0
    _
  %s7 = ssub.s32 1, %s5
  %s8 = scalar_select 0, %s7, %s5
  loop: start=0, step=1, limit=4
  $region2: #{trippy_forward.22} parent=0 // loop_pre_header
    _
  $region3: #{trippy_forward.22} parent=0 // loop_header
    %s10 = sphi 0, %s14
    %p11 = scmp.ge.s32.totalorder %s10, 4
    %s17 = sphi 0, %s36
    %s18 = sphi 0, %s32
    %s19 = sphi 0, %s28
    %s20 = sphi 0, %s17
    %s21 = sphi 0, %s18
    %s22 = sphi 0, %s19
    %s23 = sphi 0, %s20
    %s24 = sphi 0, %s21
    %s25 = sphi 0, %s22
    %s41 = sphi 0, %s43
    %s44 = sphi 0, %s41
    %s45 = sphi 0, %s44
    %s61 = sphi 0, %s45
    %s69 = sphi 0, %s71
    %s72 = sphi 0, %s69
    %s73 = sphi 0, %s72
    %s89 = sphi 0, %s73
    %s97 = sphi 0, %s99
    %s100 = sphi 0, %s97
    %s101 = sphi 0, %s100
    %s117 = sphi 0, %s101
    %s125 = sphi 0, %s127
    %s128 = sphi 0, %s125
    %s129 = sphi 0, %s128
    %s145 = sphi 0, %s129
    %s153 = sphi 0, %s155
    %s156 = sphi 0, %s153
    %s157 = sphi 0, %s156
    %s173 = sphi 0, %s157
  $region4: #{trippy_forward.22} parent=0 // loop_header_branch
    %13 = sbr.rel (%p11) target = $region8
  $region5: #{trippy_forward.22} parent=0 // loop_body
    %s15 = ssub.s32 %s10, 1
    %s16 = ssub.s32 %s10, 2
    %s26 = sadd.s32 1, %s19
    %p27 = scmp.ge.s32.totalorder %s26, 1
    %s28 = scalar_select %p27, 0, %s26
    %s29 = sadd.s32 1, %s18
    %s30 = scalar_select %p27, %s29, %s18
    %p31 = scmp.ge.s32.totalorder %s30, 1
    %s32 = scalar_select %p31, 0, %s30
    %s33 = sadd.s32 1, %s17
    %s34 = scalar_select %p31, %s33, %s17
    %p35 = scmp.ge.s32.totalorder %s34, 2
    %s36 = scalar_select %p35, 0, %s34
    %s37 = ssub.s32 %s17, %s36
    %s38 = ssub.s32 %s18, %s32
    %s39 = sor.u32 %s37, %s38
    %p40 = scmp.eq.s32.totalorder %s39, 0
    %s42 = sadd.s32 %s41, 1
    %s43 = scalar_select %p40, %s41, %s42
    %p46 = pneg %p40
    %p47 = scmp.eq.s32.totalorder %s10, 1
    %p48 = por %p46, %p47
    %p49 = scmp.ne.s32.totalorder %s41, %s44
    %p50 = scmp.eq.s32.totalorder %s10, 0
    %p51 = por %p49, %p50
    %p52 = scmp.ne.s32.totalorder %s41, %s44
    %p53 = scmp.eq.s32.totalorder %s15, 1
    %p54 = por %p52, %p53
    %p55 = scmp.ne.s32.totalorder %s44, %s45
    %p56 = scmp.eq.s32.totalorder %s15, 0
    %p57 = por %p55, %p56
    %p58 = scmp.ne.s32.totalorder %s44, %s45
    %p59 = scmp.eq.s32.totalorder %s16, 1
    %p60 = por %p58, %p59
    %p62 = scmp.ne.s32.totalorder %s45, %s61
    %p63 = scmp.eq.s32.totalorder %s16, 0
    %p64 = por %p62, %p63
    %s65 = ssub.s32 %s17, %s36
    %s66 = ssub.s32 %s19, %s28
    %s67 = sor.u32 %s65, %s66
    %p68 = scmp.eq.s32.totalorder %s67, 0
    %s70 = sadd.s32 %s69, 1
    %s71 = scalar_select %p68, %s69, %s70
    %p74 = pneg %p68
    %p75 = scmp.eq.s32.totalorder %s10, 1
    %p76 = por %p74, %p75
    %p77 = scmp.ne.s32.totalorder %s69, %s72
    %p78 = scmp.eq.s32.totalorder %s10, 0
    %p79 = por %p77, %p78
    %p80 = scmp.ne.s32.totalorder %s69, %s72
    %p81 = scmp.eq.s32.totalorder %s15, 1
    %p82 = por %p80, %p81
    %p83 = scmp.ne.s32.totalorder %s72, %s73
    %p84 = scmp.eq.s32.totalorder %s15, 0
    %p85 = por %p83, %p84
    %p86 = scmp.ne.s32.totalorder %s72, %s73
    %p87 = scmp.eq.s32.totalorder %s16, 1
    %p88 = por %p86, %p87
    %p90 = scmp.ne.s32.totalorder %s73, %s89
    %p91 = scmp.eq.s32.totalorder %s16, 0
    %p92 = por %p90, %p91
    %s93 = ssub.s32 %s17, %s36
    %s94 = ssub.s32 %s19, %s28
    %s95 = sor.u32 %s93, %s94
    %p96 = scmp.eq.s32.totalorder %s95, 0
    %s98 = sadd.s32 %s97, 1
    %s99 = scalar_select %p96, %s97, %s98
    %p102 = pneg %p96
    %p103 = scmp.eq.s32.totalorder %s10, 1
    %p104 = por %p102, %p103
    %p105 = scmp.ne.s32.totalorder %s97, %s100
    %p106 = scmp.eq.s32.totalorder %s10, 0
    %p107 = por %p105, %p106
    %p108 = scmp.ne.s32.totalorder %s97, %s100
    %p109 = scmp.eq.s32.totalorder %s15, 1
    %p110 = por %p108, %p109
    %p111 = scmp.ne.s32.totalorder %s100, %s101
    %p112 = scmp.eq.s32.totalorder %s15, 0
    %p113 = por %p111, %p112
    %p114 = scmp.ne.s32.totalorder %s100, %s101
    %p115 = scmp.eq.s32.totalorder %s16, 1
    %p116 = por %p114, %p115
    %p118 = scmp.ne.s32.totalorder %s101, %s117
    %p119 = scmp.eq.s32.totalorder %s16, 0
    %p120 = por %p118, %p119
    %s121 = ssub.s32 %s17, %s36
    %s122 = ssub.s32 %s19, %s28
    %s123 = sor.u32 %s121, %s122
    %p124 = scmp.eq.s32.totalorder %s123, 0
    %s126 = sadd.s32 %s125, 1
    %s127 = scalar_select %p124, %s125, %s126
    %p130 = pneg %p124
    %p131 = scmp.eq.s32.totalorder %s10, 1
    %p132 = por %p130, %p131
    %p133 = scmp.ne.s32.totalorder %s125, %s128
    %p134 = scmp.eq.s32.totalorder %s10, 0
    %p135 = por %p133, %p134
    %p136 = scmp.ne.s32.totalorder %s125, %s128
    %p137 = scmp.eq.s32.totalorder %s15, 1
    %p138 = por %p136, %p137
    %p139 = scmp.ne.s32.totalorder %s128, %s129
    %p140 = scmp.eq.s32.totalorder %s15, 0
    %p141 = por %p139, %p140
    %p142 = scmp.ne.s32.totalorder %s128, %s129
    %p143 = scmp.eq.s32.totalorder %s16, 1
    %p144 = por %p142, %p143
    %p146 = scmp.ne.s32.totalorder %s129, %s145
    %p147 = scmp.eq.s32.totalorder %s16, 0
    %p148 = por %p146, %p147
    %s149 = ssub.s32 %s17, %s36
    %s150 = ssub.s32 %s18, %s32
    %s151 = sor.u32 %s149, %s150
    %p152 = scmp.eq.s32.totalorder %s151, 0
    %s154 = sadd.s32 %s153, 1
    %s155 = scalar_select %p152, %s153, %s154
    %p158 = pneg %p152
    %p159 = scmp.eq.s32.totalorder %s10, 1
    %p160 = por %p158, %p159
    %p161 = scmp.ne.s32.totalorder %s153, %s156
    %p162 = scmp.eq.s32.totalorder %s10, 0
    %p163 = por %p161, %p162
    %p164 = scmp.ne.s32.totalorder %s153, %s156
    %p165 = scmp.eq.s32.totalorder %s15, 1
    %p166 = por %p164, %p165
    %p167 = scmp.ne.s32.totalorder %s156, %s157
    %p168 = scmp.eq.s32.totalorder %s15, 0
    %p169 = por %p167, %p168
    %p170 = scmp.ne.s32.totalorder %s156, %s157
    %p171 = scmp.eq.s32.totalorder %s16, 1
    %p172 = por %p170, %p171
    %p174 = scmp.ne.s32.totalorder %s157, %s173
    %p175 = scmp.eq.s32.totalorder %s16, 0
    %p176 = por %p174, %p175
    %p177 = scmp.le.s32.totalorder 1, %s10
    %p178 = scmp.lt.s32.totalorder %s10, 3
    %p179 = pnand %p177, %p178
    %p180 = pneg %p179
    // Predicated region
    $region9: #{trippy_forward.22} parent=5 // pred_check
      _
    $region10: #{trippy_forward.22} parent=5 // pred_check_branch
      %182 = sbr.rel (%p179) target = $region12
    $region11: #{trippy_forward.22} parent=5 // pred_region
      %s183 = ssub.s32 %s10, 1
    $region12: #{trippy_forward.22} parent=5 // pred_fallthru
      _
    %p184 = scmp.lt.s32.totalorder %s10, 2
    // Predicated region
    $region13: #{trippy_forward.22} parent=5 // pred_check
      %p185 = pneg %p184
    $region14: #{trippy_forward.22} parent=5 // pred_check_branch
      %187 = sbr.rel (%p185) target = $region16
    $region15: #{trippy_forward.22} parent=5 // pred_region
      // Predicated region
      $region17: #{trippy_forward.22} parent=15 // pred_check
        %p188 = pneg %p51
      $region18: #{trippy_forward.22} parent=15 // pred_check_branch
        %190 = sbr.rel (%p188) target = $region20
      $region19: #{trippy_forward.22} parent=15 // pred_region
        %p191 = scmp.lt.s32.totalorder %s17, 1
        %s192 = scalar_select %p191, %s17, 1
        %p193 = scmp.lt.s32.totalorder %s18, 0
        %s194 = scalar_select %p193, %s18, 0
        %s195 = sadd.s32 %s194, %s192
        %s196 = smul.addr %s195, 4
        %s197 = scalar_lea.vmem %s0, %s196
      $region20: #{trippy_forward.22} parent=15 // pred_fallthru
        _
      // Predicated region
      $region21: #{trippy_forward.22} parent=15 // pred_check
        %p198 = pneg %p79
      $region22: #{trippy_forward.22} parent=15 // pred_check_branch
        %200 = sbr.rel (%p198) target = $region24
      $region23: #{trippy_forward.22} parent=15 // pred_region
        %p201 = scmp.lt.s32.totalorder %s17, 1
        %s202 = scalar_select %p201, %s17, 1
        %p203 = scmp.lt.s32.totalorder %s19, 0
        %s204 = scalar_select %p203, %s19, 0
        %s205 = sadd.s32 %s204, %s202
        %s206 = smul.addr %s205, 4
        %s207 = scalar_lea.vmem %s1, %s206
      $region24: #{trippy_forward.22} parent=15 // pred_fallthru
        _
      // Predicated region
      $region25: #{trippy_forward.22} parent=15 // pred_check
        %p208 = pneg %p107
      $region26: #{trippy_forward.22} parent=15 // pred_check_branch
        %210 = sbr.rel (%p208) target = $region28
      $region27: #{trippy_forward.22} parent=15 // pred_region
        %p211 = scmp.lt.s32.totalorder %s17, 1
        %s212 = scalar_select %p211, %s17, 1
        %p213 = scmp.lt.s32.totalorder %s19, 0
        %s214 = scalar_select %p213, %s19, 0
        %s215 = sadd.s32 %s214, %s212
        %s216 = smul.addr %s215, 4
        %s217 = scalar_lea.vmem %s2, %s216
      $region28: #{trippy_forward.22} parent=15 // pred_fallthru
        _
      // Predicated region
      $region29: #{trippy_forward.22} parent=15 // pred_check
        %p218 = pneg %p135
      $region30: #{trippy_forward.22} parent=15 // pred_check_branch
        %220 = sbr.rel (%p218) target = $region32
      $region31: #{trippy_forward.22} parent=15 // pred_region
        %p221 = scmp.lt.s32.totalorder %s17, 1
        %s222 = scalar_select %p221, %s17, 1
        %p223 = scmp.lt.s32.totalorder %s19, 0
        %s224 = scalar_select %p223, %s19, 0
        %s225 = sadd.s32 %s224, %s222
        %s226 = scalar_lea.vmem %s3, %s225
      $region32: #{trippy_forward.22} parent=15 // pred_fallthru
        _
    $region16: #{trippy_forward.22} parent=5 // pred_fallthru
      _
    %p227 = scmp.le.s32.totalorder 1, %s10
    %p228 = scmp.lt.s32.totalorder %s10, 3
    %p229 = pnand %p227, %p228
    %p230 = pneg %p229
    // Predicated region
    $region33: #{trippy_forward.22} parent=5 // pred_check
      _
    $region34: #{trippy_forward.22} parent=5 // pred_check_branch
      %232 = sbr.rel (%p229) target = $region36
    $region35: #{trippy_forward.22} parent=5 // pred_region
      %s233 = ssub.s32 %s10, 1
      %p234 = scmp.lt.s32.totalorder %s20, 1
      %s235 = scalar_select %p234, %s20, 1
      %p236 = scmp.lt.s32.totalorder %s21, 0
      %s237 = scalar_select %p236, %s21, 0
      %s238 = sadd.s32 %s237, %s235
      %s239 = smul.addr %s238, 4
      %s240 = scalar_lea.vmem %s0, %s239
      %p241 = pneg %p57
      %p242 = pneg %p54
      %p243 = scmp.lt.s32.totalorder %s20, 1
      %s244 = scalar_select %p243, %s20, 1
      %p245 = scmp.lt.s32.totalorder %s22, 0
      %s246 = scalar_select %p245, %s22, 0
      %s247 = sadd.s32 %s246, %s244
      %s248 = smul.addr %s247, 4
      %s249 = scalar_lea.vmem %s1, %s248
      %p250 = pneg %p85
      %p251 = pneg %p82
      %p252 = scmp.lt.s32.totalorder %s20, 1
      %s253 = scalar_select %p252, %s20, 1
      %p254 = scmp.lt.s32.totalorder %s22, 0
      %s255 = scalar_select %p254, %s22, 0
      %s256 = sadd.s32 %s255, %s253
      %s257 = smul.addr %s256, 4
      %s258 = scalar_lea.vmem %s2, %s257
      %p259 = pneg %p113
      %p260 = pneg %p110
      %p261 = scmp.lt.s32.totalorder %s20, 1
      %s262 = scalar_select %p261, %s20, 1
      %p263 = scmp.lt.s32.totalorder %s22, 0
      %s264 = scalar_select %p263, %s22, 0
      %s265 = sadd.s32 %s264, %s262
      %s266 = scalar_lea.vmem %s3, %s265
      %p267 = pneg %p141
      %p268 = pneg %p138
      %p269 = pneg %p169
      %p270 = pneg %p166
      %p271 = scmp.lt.s32.totalorder %s20, 1
      %s272 = scalar_select %p271, %s20, 1
      %p273 = scmp.lt.s32.totalorder %s21, 0
      %s274 = scalar_select %p273, %s21, 0
      %s275 = sadd.s32 %s274, %s272
      %s276 = smul.addr %s275, 4
      %s277 = scalar_lea.vmem %s4, %s276
      %p278 = scmp.lt.s32.totalorder %s20, 1
      %s279 = scalar_select %p278, %s20, 1
      %p280 = scmp.lt.s32.totalorder %s21, 0
      %s281 = scalar_select %p280, %s21, 0
      %s282 = sadd.s32 %s281, %s279
      %s283 = smul.addr %s282, 4
      %s284 = scalar_lea.vmem %s0, %s283
      %p285 = scmp.lt.s32.totalorder %s20, 1
      %s286 = scalar_select %p285, %s20, 1
      %p287 = scmp.lt.s32.totalorder %s22, 0
      %s288 = scalar_select %p287, %s22, 0
      %s289 = sadd.s32 %s288, %s286
      %s290 = smul.addr %s289, 4
      %s291 = scalar_lea.vmem %s1, %s290
      %p292 = scmp.lt.s32.totalorder %s20, 1
      %s293 = scalar_select %p292, %s20, 1
      %p294 = scmp.lt.s32.totalorder %s22, 0
      %s295 = scalar_select %p294, %s22, 0
      %s296 = sadd.s32 %s295, %s293
      %s297 = smul.addr %s296, 4
      %s298 = scalar_lea.vmem %s2, %s297
      %p299 = scmp.lt.s32.totalorder %s20, 1
      %s300 = scalar_select %p299, %s20, 1
      %p301 = scmp.lt.s32.totalorder %s22, 0
      %s302 = scalar_select %p301, %s22, 0
      %s303 = sadd.s32 %s302, %s300
      %s304 = scalar_lea.vmem %s3, %s303
      %p305 = scmp.lt.s32.totalorder %s20, 1
      %s306 = scalar_select %p305, %s20, 1
      %p307 = scmp.lt.s32.totalorder %s21, 0
      %s308 = scalar_select %p307, %s21, 0
      %s309 = sadd.s32 %s308, %s306
      %s310 = smul.addr %s309, 4
      %s311 = scalar_lea.vmem %s4, %s310
      %p313 = scmp.eq.s32.totalorder %s22, 0
      // Predicated region
      $region37: #{trippy_forward.22} parent=35 // pred_check
        %p314 = pneg %p313
      $region38: #{trippy_forward.22} parent=35 // pred_check_branch
        %316 = sbr.rel (%p314) target = $region40
      $region39: #{trippy_forward.22} parent=35 // pred_region
        %vm317 = vcmask 261120
        %318 = vst.msk [vmem:[#allocation2] sm:$0xff] %vm317, -inf
        %319 = vst.msk [vmem:[#allocation3] sm:$0xff] %vm317, 0.0
        %320 = vst.msk [vmem:[#allocation4] sm:$0xff] %vm317, 0.0
      $region40: #{trippy_forward.22} parent=35 // pred_fallthru
        _
      %v321 = vld [vmem:[%s284] sm:$0xf]
      %v322 = vld [vmem:[%s291] sm:$0xf]
      %v323 = vld [vmem:[%s298] sm:$0xf]
      %v324 = vld [vmem:[%s304] sm:$0x1]
      %v326 = vperm.slane %v324, 0
      %vm328 = vcmask 64512
      %v330 = vsel %vm328, %v321, 0
      %v333 = vsel %vm328, %v322, 0
      %335 = vmatpush.bf16.xpose.msra.mxu0 0
      %336 = vmatpush.bf16.xpose.msra.mxu0 0
      %337 = vmatpush.bf16.xpose.msra.mxu0 0
      %338 = vmatpush.bf16.xpose.msra.mxu0 0
      %339 = vmatpush.bf16.xpose.msra.mxu0 0
      %340 = vmatpush.bf16.xpose.msra.mxu0 0
      %341 = vmatpush.bf16.xpose.msra.mxu0 0
      %342 = vmatpush.bf16.xpose.msra.mxu0 %v333
      %343 = vmatmul.bf16.gmra.mxu0 %v330
      %v344 = vpop.f32.mrf.mxu0
      %v345 = vadd.f32 %v326, %v344
      %v346 = vpop.f32.mrf.mxu0
      %347 = vdwg.mxu0
      %v348 = vld [vmem:[#allocation2] sm:$0xff]
      %v349 = vsel %vm328, %v345, -inf
      %350 = vmax.xlane.f32.xlu0 %v349
      %v351 = vpop.xlane.xlu0 %350
      %v352 = vmax.f32 %v348, %v351
      %v353 = vsub.f32 %v348, %v352
      %v354 = vmul.f32 %v353, 1.442695
      %v355 = vpow.pop %v354
      %357 = vset.pattern.permute.xlu0 0
      %358 = vperm.xlu0 %357, %v352
      %v359 = vpop.permute.xlu0 %358
      %v361 = vsub.f32 %v345, %v359
      %v362 = vmul.f32 %v361, 1.442695
      %v363 = vpow.pop %v362
      %v364 = vld [vmem:[#allocation3] sm:$0xff]
      %v365 = vmul.f32 %v355, %v364
      %v366 = vsel %vm328, %v363, 0.0
      %367 = vadd.xlane.f32.xlu0 %v366
      %v368 = vpop.xlane.xlu0 %367
      %v369 = vadd.f32 %v365, %v368
      %370 = vst.msk [vmem:[#allocation3] sm:$0xff] %vm328, %v369
      %v371 = vld [vmem:[#allocation4] sm:$0xff]
      %v372 = vmul.f32 %v355, %v371
      %v373 = vpack.c.bf16 %v363, %v363
      %v375 = vsel %vm328, %v373, 0
      %vm377 = vcmask 1043456
      %v379 = vsel %vm377, %v323, 0
      %381 = vmatpush.bf16.msra.mxu0 0
      %382 = vmatpush.bf16.msra.mxu0 0
      %383 = vmatpush.bf16.msra.mxu0 0
      %384 = vmatpush.bf16.msra.mxu0 0
      %385 = vmatpush.bf16.msra.mxu0 0
      %386 = vmatpush.bf16.msra.mxu0 0
      %387 = vmatpush.bf16.msra.mxu0 0
      %388 = vmatpush.bf16.msra.mxu0 %v379
      %389 = vmatmul.bf16.gmra.mxu0 %v375
      %v390 = vpop.f32.mrf.mxu0
      %v391 = vadd.f32 0.0, %v390
      %v392 = vpop.f32.mrf.mxu0
      %393 = vdwg.mxu0
      %v394 = vadd.f32 %v372, %v391
      %395 = vst.msk [vmem:[#allocation4] sm:$0xff] %vm328, %v394
      %396 = vst.msk [vmem:[#allocation2] sm:$0xff] %vm328, %v352
      %v398 = vunpack.c.l.b16 %v321
      %v399 = vpack.c.b16 %v398, %v398
      %400 = vrot.lane.b32.xlu0 %v399, 120
      %v401 = vpop.permute.xlu0 %400
      %v403 = vunpack.c.l.b16 %v322
      %v404 = vpack.c.b16 %v403, %v403
      %405 = vrot.lane.b32.xlu0 %v404, 120
      %v406 = vpop.permute.xlu0 %405
      %v408 = vsel %vm328, %v401, 0
      %v411 = vsel %vm328, %v406, 0
      %413 = vmatpush.bf16.xpose.msra.mxu0 0
      %414 = vmatpush.bf16.xpose.msra.mxu0 0
      %415 = vmatpush.bf16.xpose.msra.mxu0 0
      %416 = vmatpush.bf16.xpose.msra.mxu0 0
      %417 = vmatpush.bf16.xpose.msra.mxu0 0
      %418 = vmatpush.bf16.xpose.msra.mxu0 0
      %419 = vmatpush.bf16.xpose.msra.mxu0 0
      %420 = vmatpush.bf16.xpose.msra.mxu0 %v411
      %421 = vmatmul.bf16.gmra.mxu0 %v408
      %v422 = vpop.f32.mrf.mxu0
      %v423 = vadd.f32 %v326, %v422
      %v424 = vpop.f32.mrf.mxu0
      %425 = vdwg.mxu0
      %v426 = vld [vmem:[#allocation2] sm:$0xff]
      %v427 = vsel %vm328, %v423, -inf
      %428 = vmax.xlane.f32.xlu0 %v427
      %v429 = vpop.xlane.xlu0 %428
      %v430 = vmax.f32 %v426, %v429
      %v431 = vsub.f32 %v426, %v430
      %v432 = vmul.f32 %v431, 1.442695
      %v433 = vpow.pop %v432
      %435 = vset.pattern.permute.xlu0 8
      %436 = vperm.xlu0 %435, %v430
      %v437 = vpop.permute.xlu0 %436
      %v439 = vsub.f32 %v423, %v437
      %v440 = vmul.f32 %v439, 1.442695
      %v441 = vpow.pop %v440
      %v442 = vld [vmem:[#allocation3] sm:$0xff]
      %v443 = vmul.f32 %v433, %v442
      %v444 = vsel %vm328, %v441, 0.0
      %445 = vadd.xlane.f32.xlu0 %v444
      %v446 = vpop.xlane.xlu0 %445
      %v447 = vadd.f32 %v443, %v446
      %vm448 = vcmask 130112
      %449 = vst.msk [vmem:[#allocation3] sm:$0xff] %vm448, %v447
      %v450 = vld [vmem:[#allocation4] sm:$0xff]
      %v451 = vmul.f32 %v433, %v450
      %v452 = vpack.c.bf16 %v441, %v441
      %v454 = vunpack.c.l.b16 %v323
      %v455 = vpack.c.b16 %v454, %v454
      %456 = vrot.lane.b32.xlu0 %v455, 120
      %v457 = vpop.permute.xlu0 %456
      %v459 = vsel %vm328, %v452, 0
      %v462 = vsel %vm377, %v457, 0
      %464 = vmatpush.bf16.msra.mxu0 0
      %465 = vmatpush.bf16.msra.mxu0 0
      %466 = vmatpush.bf16.msra.mxu0 0
      %467 = vmatpush.bf16.msra.mxu0 0
      %468 = vmatpush.bf16.msra.mxu0 0
      %469 = vmatpush.bf16.msra.mxu0 0
      %470 = vmatpush.bf16.msra.mxu0 0
      %471 = vmatpush.bf16.msra.mxu0 %v462
      %472 = vmatmul.bf16.gmra.mxu0 %v459
      %v473 = vpop.f32.mrf.mxu0
      %v474 = vadd.f32 0.0, %v473
      %v475 = vpop.f32.mrf.mxu0
      %476 = vdwg.mxu0
      %478 = vrot.lane.b32.xlu0 %v474, 8
      %v479 = vpop.permute.xlu0 %478
      %v481 = vadd.f32 %v451, %v479
      %482 = vst.msk [vmem:[#allocation4] sm:$0xff] %vm448, %v481
      %483 = vst.msk [vmem:[#allocation2] sm:$0xff] %vm448, %v430
      %484 = vrot.lane.b32.xlu0 %v399, 112
      %v485 = vpop.permute.xlu0 %484
      %486 = vrot.lane.b32.xlu0 %v404, 112
      %v487 = vpop.permute.xlu0 %486
      %v489 = vsel %vm328, %v485, 0
      %v492 = vsel %vm328, %v487, 0
      %494 = vmatpush.bf16.xpose.msra.mxu0 0
      %495 = vmatpush.bf16.xpose.msra.mxu0 0
      %496 = vmatpush.bf16.xpose.msra.mxu0 0
      %497 = vmatpush.bf16.xpose.msra.mxu0 0
      %498 = vmatpush.bf16.xpose.msra.mxu0 0
      %499 = vmatpush.bf16.xpose.msra.mxu0 0
      %500 = vmatpush.bf16.xpose.msra.mxu0 0
      %501 = vmatpush.bf16.xpose.msra.mxu0 %v492
      %502 = vmatmul.bf16.gmra.mxu0 %v489
      %v503 = vpop.f32.mrf.mxu0
      %v504 = vadd.f32 %v326, %v503
      %v505 = vpop.f32.mrf.mxu0
      %506 = vdwg.mxu0
      %v507 = vld [vmem:[#allocation2] sm:$0xff]
      %v508 = vsel %vm328, %v504, -inf
      %509 = vmax.xlane.f32.xlu0 %v508
      %v510 = vpop.xlane.xlu0 %509
      %v511 = vmax.f32 %v507, %v510
      %v512 = vsub.f32 %v507, %v511
      %v513 = vmul.f32 %v512, 1.442695
      %v514 = vpow.pop %v513
      %516 = vset.pattern.permute.xlu0 16
      %517 = vperm.xlu0 %516, %v511
      %v518 = vpop.permute.xlu0 %517
      %v520 = vsub.f32 %v504, %v518
      %v521 = vmul.f32 %v520, 1.442695
      %v522 = vpow.pop %v521
      %v523 = vld [vmem:[#allocation3] sm:$0xff]
      %v524 = vmul.f32 %v514, %v523
      %v525 = vsel %vm328, %v522, 0.0
      %526 = vadd.xlane.f32.xlu0 %v525
      %v527 = vpop.xlane.xlu0 %526
      %v528 = vadd.f32 %v524, %v527
      %vm529 = vcmask 195712
      %530 = vst.msk [vmem:[#allocation3] sm:$0xff] %vm529, %v528
      %v531 = vld [vmem:[#allocation4] sm:$0xff]
      %v532 = vmul.f32 %v514, %v531
      %v533 = vpack.c.bf16 %v522, %v522
      %534 = vrot.lane.b32.xlu0 %v455, 112
      %v535 = vpop.permute.xlu0 %534
      %v537 = vsel %vm328, %v533, 0
      %v540 = vsel %vm377, %v535, 0
      %542 = vmatpush.bf16.msra.mxu0 0
      %543 = vmatpush.bf16.msra.mxu0 0
      %544 = vmatpush.bf16.msra.mxu0 0
      %545 = vmatpush.bf16.msra.mxu0 0
      %546 = vmatpush.bf16.msra.mxu0 0
      %547 = vmatpush.bf16.msra.mxu0 0
      %548 = vmatpush.bf16.msra.mxu0 0
      %549 = vmatpush.bf16.msra.mxu0 %v540
      %550 = vmatmul.bf16.gmra.mxu0 %v537
      %v551 = vpop.f32.mrf.mxu0
      %v552 = vadd.f32 0.0, %v551
      %v553 = vpop.f32.mrf.mxu0
      %554 = vdwg.mxu0
      %556 = vrot.lane.b32.xlu0 %v552, 16
      %v557 = vpop.permute.xlu0 %556
      %v559 = vadd.f32 %v532, %v557
      %560 = vst.msk [vmem:[#allocation4] sm:$0xff] %vm529, %v559
      %561 = vst.msk [vmem:[#allocation2] sm:$0xff] %vm529, %v511
      %562 = vrot.lane.b32.xlu0 %v399, 104
      %v563 = vpop.permute.xlu0 %562
      %564 = vrot.lane.b32.xlu0 %v404, 104
      %v565 = vpop.permute.xlu0 %564
      %v567 = vsel %vm328, %v563, 0
      %v570 = vsel %vm328, %v565, 0
      %572 = vmatpush.bf16.xpose.msra.mxu0 0
      %573 = vmatpush.bf16.xpose.msra.mxu0 0
      %574 = vmatpush.bf16.xpose.msra.mxu0 0
      %575 = vmatpush.bf16.xpose.msra.mxu0 0
      %576 = vmatpush.bf16.xpose.msra.mxu0 0
      %577 = vmatpush.bf16.xpose.msra.mxu0 0
      %578 = vmatpush.bf16.xpose.msra.mxu0 0
      %579 = vmatpush.bf16.xpose.msra.mxu0 %v570
      %580 = vmatmul.bf16.gmra.mxu0 %v567
      %v581 = vpop.f32.mrf.mxu0
      %v582 = vadd.f32 %v326, %v581
      %v583 = vpop.f32.mrf.mxu0
      %584 = vdwg.mxu0
      %v585 = vld [vmem:[#allocation2] sm:$0xff]
      %v586 = vsel %vm328, %v582, -inf
      %587 = vmax.xlane.f32.xlu0 %v586
      %v588 = vpop.xlane.xlu0 %587
      %v589 = vmax.f32 %v585, %v588
      %v590 = vsub.f32 %v585, %v589
      %v591 = vmul.f32 %v590, 1.442695
      %v592 = vpow.pop %v591
      %594 = vset.pattern.permute.xlu0 24
      %595 = vperm.xlu0 %594, %v589
      %v596 = vpop.permute.xlu0 %595
      %v598 = vsub.f32 %v582, %v596
      %v599 = vmul.f32 %v598, 1.442695
      %v600 = vpow.pop %v599
      %v601 = vld [vmem:[#allocation3] sm:$0xff]
      %v602 = vmul.f32 %v592, %v601
      %v603 = vsel %vm328, %v600, 0.0
      %604 = vadd.xlane.f32.xlu0 %v603
      %v605 = vpop.xlane.xlu0 %604
      %v606 = vadd.f32 %v602, %v605
      %vm607 = vcmask 261312
      %608 = vst.msk [vmem:[#allocation3] sm:$0xff] %vm607, %v606
      %v609 = vld [vmem:[#allocation4] sm:$0xff]
      %v610 = vmul.f32 %v592, %v609
      %v611 = vpack.c.bf16 %v600, %v600
      %612 = vrot.lane.b32.xlu0 %v455, 104
      %v613 = vpop.permute.xlu0 %612
      %v615 = vsel %vm328, %v611, 0
      %v618 = vsel %vm377, %v613, 0
      %620 = vmatpush.bf16.msra.mxu0 0
      %621 = vmatpush.bf16.msra.mxu0 0
      %622 = vmatpush.bf16.msra.mxu0 0
      %623 = vmatpush.bf16.msra.mxu0 0
      %624 = vmatpush.bf16.msra.mxu0 0
      %625 = vmatpush.bf16.msra.mxu0 0
      %626 = vmatpush.bf16.msra.mxu0 0
      %627 = vmatpush.bf16.msra.mxu0 %v618
      %628 = vmatmul.bf16.gmra.mxu0 %v615
      %v629 = vpop.f32.mrf.mxu0
      %v630 = vadd.f32 0.0, %v629
      %v631 = vpop.f32.mrf.mxu0
      %632 = vdwg.mxu0
      %634 = vrot.lane.b32.xlu0 %v630, 24
      %v635 = vpop.permute.xlu0 %634
      %v637 = vadd.f32 %v610, %v635
      %638 = vst.msk [vmem:[#allocation4] sm:$0xff] %vm607, %v637
      %639 = vst.msk [vmem:[#allocation2] sm:$0xff] %vm607, %v589
      // Predicated region
      $region41: #{trippy_forward.22} parent=35 // pred_check
        %p640 = pneg %p313
      $region42: #{trippy_forward.22} parent=35 // pred_check_branch
        %642 = sbr.rel (%p640) target = $region44
      $region43: #{trippy_forward.22} parent=35 // pred_region
        %v643 = vld [vmem:[#allocation4] sm:$0xff]
        %v644 = vld [vmem:[#allocation3] sm:$0xff]
        %v645 = vrcp.pop %v644
        %v646 = vmul.f32 %v643, %v645
        %v647 = vpack.c.bf16 %v646, %v646
        %vm648 = vcmask 257024
        %649 = vst.msk [vmem:[%s311] sm:$0xf] %vm648, %v647
      $region44: #{trippy_forward.22} parent=35 // pred_fallthru
        _
      %p650 = scmp.lt.s32.totalorder %s20, 1
      %s651 = scalar_select %p650, %s20, 1
      %p652 = scmp.lt.s32.totalorder %s21, 0
      %s653 = scalar_select %p652, %s21, 0
      %s654 = sadd.s32 %s653, %s651
      %s655 = smul.addr %s654, 4
      %s656 = scalar_lea.vmem %s4, %s655
      // Predicated region
      $region45: #{trippy_forward.22} parent=35 // pred_check
        %p657 = pneg %p166
      $region46: #{trippy_forward.22} parent=35 // pred_check_branch
        %659 = sbr.rel (%p657) target = $region48
      $region47: #{trippy_forward.22} parent=35 // pred_region
        _
      $region48: #{trippy_forward.22} parent=35 // pred_fallthru
        _
    $region36: #{trippy_forward.22} parent=5 // pred_fallthru
      _
    %p660 = scmp.le.s32.totalorder 2, %s10
    // Predicated region
    $region49: #{trippy_forward.22} parent=5 // pred_check
      %p661 = pneg %p660
    $region50: #{trippy_forward.22} parent=5 // pred_check_branch
      %663 = sbr.rel (%p661) target = $region52
    $region51: #{trippy_forward.22} parent=5 // pred_region
      %s664 = ssub.s32 %s10, 2
      // Predicated region
      $region53: #{trippy_forward.22} parent=51 // pred_check
        %p665 = pneg %p172
      $region54: #{trippy_forward.22} parent=51 // pred_check_branch
        %667 = sbr.rel (%p665) target = $region56
      $region55: #{trippy_forward.22} parent=51 // pred_region
        %p668 = scmp.lt.s32.totalorder %s23, 1
        %s669 = scalar_select %p668, %s23, 1
        %p670 = scmp.lt.s32.totalorder %s24, 0
        %s671 = scalar_select %p670, %s24, 0
        %s672 = sadd.s32 %s671, %s669
        %s673 = smul.addr %s672, 4
        %s674 = scalar_lea.vmem %s4, %s673
      $region56: #{trippy_forward.22} parent=51 // pred_fallthru
        _
    $region52: #{trippy_forward.22} parent=5 // pred_fallthru
      _
  $region6: #{trippy_forward.22} parent=0 // loop_footer
    %s14 = sadd.s32 1, %s10
  $region7: #{trippy_forward.22} parent=0 // loop_footer_branch
    %9 = sbr.rel target = $region3
  $region8: #{trippy_forward.22} parent=0 // loop_exit
    _

// kernel: trippy_forward.24
$region0: #{trippy_forward.24}
  #allocation0 [shape = 'u32[]', space=smem, size = 0x4, offset = 0x4, fixed_abs, tag = 'smem constant byte address 0x4 - core index']
  #allocation1 [shape = 'u32[72,128]{1,0:T(1,128)}', space=vmem, size = 0x9000, scoped, tag = 'internal scratch']
  %s0 = inlined_call_operand.vmem [shape: bf16[16,32], index: 0, kind: input, shape index: {}]
  %s1 = inlined_call_operand.vmem [shape: bf16[32,64], index: 1, kind: input, shape index: {}]
  %s2 = inlined_call_operand.vmem [shape: f32[1,64], index: 2, kind: input, shape index: {}]
  %s3 = inlined_call_operand.vmem [shape: bf16[16,64], index: 3, kind: output, shape index: {}]
  %s4 = sld [smem:[#allocation0]]
  $region22: #{trippy_forward.24} parent=0
    _
  %s6 = ssub.s32 1, %s4
  %s7 = scalar_select 0, %s6, %s4
  // Predicated region
  $region2: #{trippy_forward.24} parent=0 // pred_check
    _
  $region3: #{trippy_forward.24} parent=0 // pred_check_branch
    %9 = sbr.rel (0) target = $region5
  $region4: #{trippy_forward.24} parent=0 // pred_region
    _
  $region5: #{trippy_forward.24} parent=0 // pred_fallthru
    _
  // Predicated region
  $region6: #{trippy_forward.24} parent=0 // pred_check
    _
  $region7: #{trippy_forward.24} parent=0 // pred_check_branch
    %11 = sbr.rel (0) target = $region9
  $region8: #{trippy_forward.24} parent=0 // pred_region
    _
  $region9: #{trippy_forward.24} parent=0 // pred_fallthru
    _
  // Predicated region
  $region10: #{trippy_forward.24} parent=0 // pred_check
    _
  $region11: #{trippy_forward.24} parent=0 // pred_check_branch
    %13 = sbr.rel (0) target = $region13
  $region12: #{trippy_forward.24} parent=0 // pred_region
    _
  $region13: #{trippy_forward.24} parent=0 // pred_fallthru
    _
  %v15 = vld [vmem:[%s0] sm:$0xf]
  %v16 = vld [vmem:[%s0 + $0x4] sm:$0xf]
  %v17 = vld [vmem:[%s1] sm:$0xf]
  %v18 = vld [vmem:[%s1 + $0x4] sm:$0xf]
  %v19 = vld [vmem:[%s1 + $0x8] sm:$0xf]
  %v20 = vld [vmem:[%s1 + $0xc] sm:$0xf]
  %v21 = vld [vmem:[%s2] sm:$0x1]
  %v23 = vperm.slane %v21, 0
  %v27 = vunpack.c.l.b16 %v15
  %v28 = vunpack.c.l.b16 %v16
  %v29 = vpack.c.b16 %v28, %v27
  %v34 = vunpack.c.l.b16 %v17
  %v35 = vunpack.c.l.b16 %v18
  %v36 = vunpack.c.l.b16 %v19
  %v37 = vunpack.c.l.b16 %v20
  %v38 = vpack.c.b16 %v35, %v34
  %v39 = vpack.c.b16 %v37, %v36
  %vm42 = vcmask 261120
  %v44 = vsel %vm42, %v29, 0
  %46 = vmatpush.bf16.msra.mxu0 0
  %47 = vmatpush.bf16.msra.mxu0 0
  %48 = vmatpush.bf16.msra.mxu0 0
  %49 = vmatpush.bf16.msra.mxu0 0
  %50 = vmatpush.bf16.msra.mxu0 0
  %51 = vmatpush.bf16.msra.mxu0 0
  %52 = vmatpush.bf16.msra.mxu0 %v39
  %53 = vmatpush.bf16.msra.mxu0 %v38
  %54 = vmatmul.bf16.gmra.mxu0 %v44
  %v55 = vpop.f32.mrf.mxu0
  %v56 = vadd.f32 %v23, %v55
  %v57 = vpop.f32.mrf.mxu0
  %v58 = vadd.f32 %v23, %v57
  %59 = vdwg.mxu0
  %v60 = vmul.f32 %v56, %v56
  %v61 = vmul.f32 %v58, %v58
  %v62 = vmul.f32 %v56, %v60
  %v63 = vmul.f32 %v58, %v61
  %v64 = vmul.f32 %v62, 0.044715
  %v65 = vmul.f32 %v63, 0.044715
  %v66 = vadd.f32 %v56, %v64
  %v67 = vadd.f32 %v58, %v65
  %v68 = vmul.f32 %v66, 0.7978846
  %v69 = vmul.f32 %v67, 0.7978846
  %v70 = vtanh.pop %v68
  %v71 = vtanh.pop %v69
  %v72 = vadd.f32 %v70, 1.0
  %v73 = vadd.f32 %v71, 1.0
  %v74 = vmul.f32 %v72, 0.5
  %v75 = vmul.f32 %v73, 0.5
  %v76 = vmul.f32 %v56, %v74
  %v77 = vmul.f32 %v58, %v75
  %v78 = vpack.c.bf16 %v76, %v76
  %v79 = vpack.c.bf16 %v77, %v77
  %vm80 = vcmask 519168
  %81 = vst.msk [vmem:[%s3] sm:$0xf] %vm80, %v78
  %82 = vst.msk [vmem:[%s3 + $0x4] sm:$0xf] %vm80, %v79
  // Predicated region
  $region14: #{trippy_forward.24} parent=0 // pred_check
    _
  $region15: #{trippy_forward.24} parent=0 // pred_check_branch
    %84 = sbr.rel (0) target = $region17
  $region16: #{trippy_forward.24} parent=0 // pred_region
    _
  $region17: #{trippy_forward.24} parent=0 // pred_fallthru
    _
  // Predicated region
  $region18: #{trippy_forward.24} parent=0 // pred_check
    _
  $region19: #{trippy_forward.24} parent=0 // pred_check_branch
    %86 = sbr.rel (0) target = $region21
  $region20: #{trippy_forward.24} parent=0 // pred_region
    _
  $region21: #{trippy_forward.24} parent=0 // pred_fallthru
    _

// kernel: trippy_forward.33
$region0: #{trippy_forward.33}
  #allocation0 [shape = 'u32[]', space=smem, size = 0x4, offset = 0x4, fixed_abs, tag = 'smem constant byte address 0x4 - core index']
  #allocation1 [shape = 'u32[72,128]{1,0:T(1,128)}', space=vmem, size = 0x9000, scoped, tag = 'internal scratch']
  %s0 = inlined_call_operand.vmem [shape: bf16[2,32], index: 0, kind: input, shape index: {}]
  %s1 = inlined_call_operand.vmem [shape: bf16[32,32], index: 1, kind: input, shape index: {}]
  %s2 = inlined_call_operand.vmem [shape: f32[1,32], index: 2, kind: input, shape index: {}]
  %s3 = inlined_call_operand.vmem [shape: bf16[2,32], index: 3, kind: output, shape index: {}]
  %s4 = sld [smem:[#allocation0]]
  $region22: #{trippy_forward.33} parent=0
    _
  %s6 = ssub.s32 1, %s4
  %s7 = scalar_select 0, %s6, %s4
  // Predicated region
  $region2: #{trippy_forward.33} parent=0 // pred_check
    _
  $region3: #{trippy_forward.33} parent=0 // pred_check_branch
    %9 = sbr.rel (0) target = $region5
  $region4: #{trippy_forward.33} parent=0 // pred_region
    _
  $region5: #{trippy_forward.33} parent=0 // pred_fallthru
    _
  // Predicated region
  $region6: #{trippy_forward.33} parent=0 // pred_check
    _
  $region7: #{trippy_forward.33} parent=0 // pred_check_branch
    %11 = sbr.rel (0) target = $region9
  $region8: #{trippy_forward.33} parent=0 // pred_region
    _
  $region9: #{trippy_forward.33} parent=0 // pred_fallthru
    _
  // Predicated region
  $region10: #{trippy_forward.33} parent=0 // pred_check
    _
  $region11: #{trippy_forward.33} parent=0 // pred_check_branch
    %13 = sbr.rel (0) target = $region13
  $region12: #{trippy_forward.33} parent=0 // pred_region
    _
  $region13: #{trippy_forward.33} parent=0 // pred_fallthru
    _
  %v15 = vld [vmem:[%s0] sm:$0x1]
  %v16 = vld [vmem:[%s1] sm:$0xf]
  %v17 = vld [vmem:[%s1 + $0x4] sm:$0xf]
  %v18 = vld [vmem:[%s1 + $0x8] sm:$0xf]
  %v19 = vld [vmem:[%s1 + $0xc] sm:$0xf]
  %v20 = vld [vmem:[%s2] sm:$0x1]
  %v22 = vperm.slane %v20, 0
  %v28 = vunpack.c.l.b16 %v16
  %v29 = vunpack.c.l.b16 %v17
  %v30 = vunpack.c.l.b16 %v18
  %v31 = vunpack.c.l.b16 %v19
  %v32 = vpack.c.b16 %v29, %v28
  %v33 = vpack.c.b16 %v31, %v30
  %vm36 = vcmask 261120
  %v38 = vsel %vm36, %v15, 0
  %40 = vmatpush.bf16.msra.mxu0 0
  %41 = vmatpush.bf16.msra.mxu0 0
  %42 = vmatpush.bf16.msra.mxu0 0
  %43 = vmatpush.bf16.msra.mxu0 0
  %44 = vmatpush.bf16.msra.mxu0 0
  %45 = vmatpush.bf16.msra.mxu0 0
  %46 = vmatpush.bf16.msra.mxu0 %v33
  %47 = vmatpush.bf16.msra.mxu0 %v32
  %48 = vmatmul.bf16.gmra.mxu0 %v38
  %v49 = vpop.f32.mrf.mxu0
  %v50 = vadd.f32 %v22, %v49
  %v51 = vpop.f32.mrf.mxu0
  %52 = vdwg.mxu0
  %v53 = vtanh.pop %v50
  %v54 = vpack.c.bf16 %v53, %v53
  %vm55 = vcmask 253952
  %56 = vst.msk [vmem:[%s3] sm:$0x1] %vm55, %v54
  // Predicated region
  $region14: #{trippy_forward.33} parent=0 // pred_check
    _
  $region15: #{trippy_forward.33} parent=0 // pred_check_branch
    %58 = sbr.rel (0) target = $region17
  $region16: #{trippy_forward.33} parent=0 // pred_region
    _
  $region17: #{trippy_forward.33} parent=0 // pred_fallthru
    _
  // Predicated region
  $region18: #{trippy_forward.33} parent=0 // pred_check
    _
  $region19: #{trippy_forward.33} parent=0 // pred_check_branch
    %60 = sbr.rel (0) target = $region21
  $region20: #{trippy_forward.33} parent=0 // pred_region
    _
  $region21: #{trippy_forward.33} parent=0 // pred_fallthru
    _

// kernel: trippy_forward.25
$region0: #{trippy_forward.25}
  #allocation0 [shape = 'u32[]', space=smem, size = 0x4, offset = 0x4, fixed_abs, tag = 'smem constant byte address 0x4 - core index']
  #allocation1 [shape = 'u32[72,128]{1,0:T(1,128)}', space=vmem, size = 0x9000, scoped, tag = 'internal scratch']
  %s0 = inlined_call_operand.vmem [shape: bf16[16,64], index: 0, kind: input, shape index: {}]
  %s1 = inlined_call_operand.vmem [shape: bf16[64,32], index: 1, kind: input, shape index: {}]
  %s2 = inlined_call_operand.vmem [shape: f32[1,32], index: 2, kind: input, shape index: {}]
  %s3 = inlined_call_operand.vmem [shape: bf16[16,32], index: 3, kind: input, shape index: {}]
  %s4 = inlined_call_operand.vmem [shape: f32[1,32], index: 4, kind: input, shape index: {}]
  %s5 = inlined_call_operand.vmem [shape: f32[1,32], index: 5, kind: input, shape index: {}]
  %s6 = inlined_call_operand.vmem [shape: bf16[16,32], index: 6, kind: output, shape index: {}]
  %s7 = sld [smem:[#allocation0]]
  $region34: #{trippy_forward.25} parent=0
    _
  %s9 = ssub.s32 1, %s7
  %s10 = scalar_select 0, %s9, %s7
  // Predicated region
  $region2: #{trippy_forward.25} parent=0 // pred_check
    _
  $region3: #{trippy_forward.25} parent=0 // pred_check_branch
    %12 = sbr.rel (0) target = $region5
  $region4: #{trippy_forward.25} parent=0 // pred_region
    _
  $region5: #{trippy_forward.25} parent=0 // pred_fallthru
    _
  // Predicated region
  $region6: #{trippy_forward.25} parent=0 // pred_check
    _
  $region7: #{trippy_forward.25} parent=0 // pred_check_branch
    %14 = sbr.rel (0) target = $region9
  $region8: #{trippy_forward.25} parent=0 // pred_region
    _
  $region9: #{trippy_forward.25} parent=0 // pred_fallthru
    _
  // Predicated region
  $region10: #{trippy_forward.25} parent=0 // pred_check
    _
  $region11: #{trippy_forward.25} parent=0 // pred_check_branch
    %16 = sbr.rel (0) target = $region13
  $region12: #{trippy_forward.25} parent=0 // pred_region
    _
  $region13: #{trippy_forward.25} parent=0 // pred_fallthru
    _
  // Predicated region
  $region14: #{trippy_forward.25} parent=0 // pred_check
    _
  $region15: #{trippy_forward.25} parent=0 // pred_check_branch
    %18 = sbr.rel (0) target = $region17
  $region16: #{trippy_forward.25} parent=0 // pred_region
    _
  $region17: #{trippy_forward.25} parent=0 // pred_fallthru
    _
  // Predicated region
  $region18: #{trippy_forward.25} parent=0 // pred_check
    _
  $region19: #{trippy_forward.25} parent=0 // pred_check_branch
    %20 = sbr.rel (0) target = $region21
  $region20: #{trippy_forward.25} parent=0 // pred_region
    _
  $region21: #{trippy_forward.25} parent=0 // pred_fallthru
    _
  // Predicated region
  $region22: #{trippy_forward.25} parent=0 // pred_check
    _
  $region23: #{trippy_forward.25} parent=0 // pred_check_branch
    %22 = sbr.rel (0) target = $region25
  $region24: #{trippy_forward.25} parent=0 // pred_region
    _
  $region25: #{trippy_forward.25} parent=0 // pred_fallthru
    _
  %v24 = vld [vmem:[%s0] sm:$0xf]
  %v25 = vld [vmem:[%s0 + $0x4] sm:$0xf]
  %v26 = vld [vmem:[%s1] sm:$0xf]
  %v27 = vld [vmem:[%s1 + $0x4] sm:$0xf]
  %v28 = vld [vmem:[%s1 + $0x8] sm:$0xf]
  %v29 = vld [vmem:[%s1 + $0xc] sm:$0xf]
  %v30 = vld [vmem:[%s1 + $0x10] sm:$0xf]
  %v31 = vld [vmem:[%s1 + $0x14] sm:$0xf]
  %v32 = vld [vmem:[%s1 + $0x18] sm:$0xf]
  %v33 = vld [vmem:[%s1 + $0x1c] sm:$0xf]
  %v34 = vld [vmem:[%s2] sm:$0x1]
  %v36 = vperm.slane %v34, 0
  %v40 = vunpack.c.l.b16 %v24
  %v41 = vunpack.c.l.b16 %v25
  %v42 = vpack.c.b16 %v41, %v40
  %v51 = vunpack.c.l.b16 %v26
  %v52 = vunpack.c.l.b16 %v27
  %v53 = vunpack.c.l.b16 %v28
  %v54 = vunpack.c.l.b16 %v29
  %v55 = vunpack.c.l.b16 %v30
  %v56 = vunpack.c.l.b16 %v31
  %v57 = vunpack.c.l.b16 %v32
  %v58 = vunpack.c.l.b16 %v33
  %v59 = vpack.c.b16 %v52, %v51
  %v60 = vpack.c.b16 %v54, %v53
  %v61 = vpack.c.b16 %v56, %v55
  %v62 = vpack.c.b16 %v58, %v57
  %vm67 = vcmask 523264
  %v69 = vsel %vm67, %v42, 0
  %71 = vmatpush.bf16.msra.mxu0 0
  %72 = vmatpush.bf16.msra.mxu0 0
  %73 = vmatpush.bf16.msra.mxu0 0
  %74 = vmatpush.bf16.msra.mxu0 0
  %75 = vmatpush.bf16.msra.mxu0 %v62
  %76 = vmatpush.bf16.msra.mxu0 %v61
  %77 = vmatpush.bf16.msra.mxu0 %v60
  %78 = vmatpush.bf16.msra.mxu0 %v59
  %79 = vmatmul.bf16.gmra.mxu0 %v69
  %v80 = vpop.f32.mrf.mxu0
  %v81 = vadd.f32 %v36, %v80
  %v82 = vpop.f32.mrf.mxu0
  %v83 = vadd.f32 %v36, %v82
  %84 = vdwg.mxu0
  %v85 = vld [vmem:[%s3] sm:$0xf]
  %v86 = vld [vmem:[%s3 + $0x4] sm:$0xf]
  %v87 = vunpack.c.l.bf16 %v85
  %v88 = vunpack.c.l.bf16 %v86
  %v89 = vadd.f32 %v81, %v87
  %v90 = vadd.f32 %v83, %v88
  %vm91 = vcmask 261120
  %v92 = vsel %vm91, %v89, 0.0
  %93 = vadd.xlane.f32.xlu0 %v92
  %v94 = vpop.xlane.xlu0 %93
  %v95 = vsel %vm91, %v90, 0.0
  %96 = vadd.xlane.f32.xlu0 %v95
  %v97 = vpop.xlane.xlu0 %96
  %v98 = vrcp.pop 32.0
  %v99 = vmul.f32 32.0, %v98
  %v100 = vsub.f32 1.0, %v99
  %v101 = vmul.f32 %v98, %v100
  %v102 = vadd.f32 %v98, %v101
  %vm103 = vweird.f32 %v98
  %v104 = vsel %vm103, %v98, %v102
  %v105 = vmul.f32 %v94, %v104
  %v106 = vmul.f32 %v97, %v104
  %v107 = vsub.f32 %v89, %v105
  %v108 = vsub.f32 %v90, %v106
  %v109 = vmul.f32 %v107, %v107
  %v110 = vmul.f32 %v108, %v108
  %v111 = vsel %vm91, %v109, 0.0
  %112 = vadd.xlane.f32.xlu0 %v111
  %v113 = vpop.xlane.xlu0 %112
  %v114 = vsel %vm91, %v110, 0.0
  %115 = vadd.xlane.f32.xlu0 %v114
  %v116 = vpop.xlane.xlu0 %115
  %v117 = vmul.f32 %v113, %v104
  %v118 = vmul.f32 %v116, %v104
  %v119 = vadd.f32 %v117, 1e-12
  %v120 = vadd.f32 %v118, 1e-12
  %v121 = vrsqrt.pop %v119
  %v122 = vmul.f32 %v121, %v119
  %v123 = vmul.f32 %v122, %v121
  %v124 = vmul.f32 0.5, %v123
  %v125 = vsub.f32 1.5, %v124
  %v126 = vmul.f32 %v121, %v125
  %vm127 = vweird.f32 %v119
  %vm128 = vweird.f32 %v121
  %vm129 = vmor %vm127, %vm128
  %v130 = vsel %vm129, %v121, %v126
  %v131 = vrsqrt.pop %v120
  %v132 = vmul.f32 %v131, %v120
  %v133 = vmul.f32 %v132, %v131
  %v134 = vmul.f32 0.5, %v133
  %v135 = vsub.f32 1.5, %v134
  %v136 = vmul.f32 %v131, %v135
  %vm137 = vweird.f32 %v120
  %vm138 = vweird.f32 %v131
  %vm139 = vmor %vm137, %vm138
  %v140 = vsel %vm139, %v131, %v136
  %v141 = vmul.f32 %v107, %v130
  %v142 = vmul.f32 %v108, %v140
  %v143 = vld [vmem:[%s4] sm:$0x1]
  %v145 = vperm.slane %v143, 0
  %v147 = vmul.f32 %v141, %v145
  %v148 = vmul.f32 %v142, %v145
  %v149 = vld [vmem:[%s5] sm:$0x1]
  %v151 = vperm.slane %v149, 0
  %v153 = vadd.f32 %v147, %v151
  %v154 = vadd.f32 %v148, %v151
  %v155 = vpack.c.bf16 %v153, %v153
  %v156 = vpack.c.bf16 %v154, %v154
  %vm157 = vcmask 257024
  %158 = vst.msk [vmem:[%s6] sm:$0xf] %vm157, %v155
  %159 = vst.msk [vmem:[%s6 + $0x4] sm:$0xf] %vm157, %v156
  // Predicated region
  $region26: #{trippy_forward.25} parent=0 // pred_check
    _
  $region27: #{trippy_forward.25} parent=0 // pred_check_branch
    %161 = sbr.rel (0) target = $region29
  $region28: #{trippy_forward.25} parent=0 // pred_region
    _
  $region29: #{trippy_forward.25} parent=0 // pred_fallthru
    _
  // Predicated region
  $region30: #{trippy_forward.25} parent=0 // pred_check
    _
  $region31: #{trippy_forward.25} parent=0 // pred_check_branch
    %163 = sbr.rel (0) target = $region33
  $region32: #{trippy_forward.25} parent=0 // pred_region
    _
  $region33: #{trippy_forward.25} parent=0 // pred_fallthru
    _

// kernel: trippy_forward.34
$region0: #{trippy_forward.34}
  #allocation0 [shape = 'u32[]', space=smem, size = 0x4, offset = 0x4, fixed_abs, tag = 'smem constant byte address 0x4 - core index']
  #allocation1 [shape = 'u32[72,128]{1,0:T(1,128)}', space=vmem, size = 0x9000, scoped, tag = 'internal scratch']
  %s0 = inlined_call_operand.vmem [shape: bf16[2,42], index: 0, kind: input, shape index: {}]
  %s1 = inlined_call_operand.vmem [shape: bf16[42,128], index: 1, kind: input, shape index: {}]
  %s2 = inlined_call_operand.vmem [shape: f32[1,128], index: 2, kind: input, shape index: {}]
  %s3 = inlined_call_operand.vmem [shape: f32[2,128], index: 3, kind: output, shape index: {}]
  %s4 = sld [smem:[#allocation0]]
  $region22: #{trippy_forward.34} parent=0
    _
  %s6 = ssub.s32 1, %s4
  %s7 = scalar_select 0, %s6, %s4
  // Predicated region
  $region2: #{trippy_forward.34} parent=0 // pred_check
    _
  $region3: #{trippy_forward.34} parent=0 // pred_check_branch
    %9 = sbr.rel (0) target = $region5
  $region4: #{trippy_forward.34} parent=0 // pred_region
    _
  $region5: #{trippy_forward.34} parent=0 // pred_fallthru
    _
  // Predicated region
  $region6: #{trippy_forward.34} parent=0 // pred_check
    _
  $region7: #{trippy_forward.34} parent=0 // pred_check_branch
    %11 = sbr.rel (0) target = $region9
  $region8: #{trippy_forward.34} parent=0 // pred_region
    _
  $region9: #{trippy_forward.34} parent=0 // pred_fallthru
    _
  // Predicated region
  $region10: #{trippy_forward.34} parent=0 // pred_check
    _
  $region11: #{trippy_forward.34} parent=0 // pred_check_branch
    %13 = sbr.rel (0) target = $region13
  $region12: #{trippy_forward.34} parent=0 // pred_region
    _
  $region13: #{trippy_forward.34} parent=0 // pred_fallthru
    _
  %v15 = vld [vmem:[%s0] sm:$0x1]
  %v16 = vld [vmem:[%s1] sm:$0xf]
  %v17 = vld [vmem:[%s1 + $0x4] sm:$0xf]
  %v18 = vld [vmem:[%s1 + $0x8] sm:$0xf]
  %v19 = vld [vmem:[%s1 + $0xc] sm:$0xf]
  %v20 = vld [vmem:[%s1 + $0x10] sm:$0xf]
  %v21 = vld [vmem:[%s1 + $0x14] sm:$0x1]
  %v22 = vld [vmem:[%s2] sm:$0x1]
  %v24 = vperm.slane %v22, 0
  %v32 = vunpack.c.l.b16 %v16
  %v33 = vunpack.c.l.b16 %v17
  %v34 = vunpack.c.l.b16 %v18
  %v35 = vunpack.c.l.b16 %v19
  %v36 = vunpack.c.l.b16 %v20
  %v37 = vunpack.c.l.b16 %v21
  %v38 = vpack.c.b16 %v33, %v32
  %v39 = vpack.c.b16 %v35, %v34
  %v40 = vpack.c.b16 %v37, %v36
  %vm43 = vcmask 343040
  %v45 = vsel %vm43, %v15, 0
  %vm47 = vcmask 1044480
  %v49 = vsel %vm47, %v40, 0
  %51 = vmatpush.bf16.msra.mxu0 0
  %52 = vmatpush.bf16.msra.mxu0 0
  %53 = vmatpush.bf16.msra.mxu0 0
  %54 = vmatpush.bf16.msra.mxu0 0
  %55 = vmatpush.bf16.msra.mxu0 0
  %56 = vmatpush.bf16.msra.mxu0 %v49
  %57 = vmatpush.bf16.msra.mxu0 %v39
  %58 = vmatpush.bf16.msra.mxu0 %v38
  %59 = vmatmul.bf16.gmra.mxu0 %v45
  %v60 = vpop.f32.mrf.mxu0
  %v61 = vadd.f32 %v24, %v60
  %v62 = vpop.f32.mrf.mxu0
  %63 = vdwg.mxu0
  %64 = vst [vmem:[%s3] sm:$0x3] %v61
  // Predicated region
  $region14: #{trippy_forward.34} parent=0 // pred_check
    _
  $region15: #{trippy_forward.34} parent=0 // pred_check_branch
    %66 = sbr.rel (0) target = $region17
  $region16: #{trippy_forward.34} parent=0 // pred_region
    _
  $region17: #{trippy_forward.34} parent=0 // pred_fallthru
    _
  // Predicated region
  $region18: #{trippy_forward.34} parent=0 // pred_check
    _
  $region19: #{trippy_forward.34} parent=0 // pred_check_branch
    %68 = sbr.rel (0) target = $region21
  $region20: #{trippy_forward.34} parent=0 // pred_region
    _
  $region21: #{trippy_forward.34} parent=0 // pred_fallthru
    _

// kernel: trippy_forward.35
$region0: #{trippy_forward.35}
  #allocation0 [shape = 'u32[]', space=smem, size = 0x4, offset = 0x4, fixed_abs, tag = 'smem constant byte address 0x4 - core index']
  #allocation1 [shape = 'u32[72,128]{1,0:T(1,128)}', space=vmem, size = 0x9000, scoped, tag = 'internal scratch']
  %s0 = inlined_call_operand.vmem [shape: bf16[16,32], index: 0, kind: input, shape index: {}]
  %s1 = inlined_call_operand.vmem [shape: bf16[32,128], index: 1, kind: input, shape index: {}]
  %s2 = inlined_call_operand.vmem [shape: f32[1,128], index: 2, kind: input, shape index: {}]
  %s3 = inlined_call_operand.vmem [shape: f32[16,128], index: 3, kind: output, shape index: {}]
  %s4 = sld [smem:[#allocation0]]
  $region22: #{trippy_forward.35} parent=0
    _
  %s6 = ssub.s32 1, %s4
  %s7 = scalar_select 0, %s6, %s4
  // Predicated region
  $region2: #{trippy_forward.35} parent=0 // pred_check
    _
  $region3: #{trippy_forward.35} parent=0 // pred_check_branch
    %9 = sbr.rel (0) target = $region5
  $region4: #{trippy_forward.35} parent=0 // pred_region
    _
  $region5: #{trippy_forward.35} parent=0 // pred_fallthru
    _
  // Predicated region
  $region6: #{trippy_forward.35} parent=0 // pred_check
    _
  $region7: #{trippy_forward.35} parent=0 // pred_check_branch
    %11 = sbr.rel (0) target = $region9
  $region8: #{trippy_forward.35} parent=0 // pred_region
    _
  $region9: #{trippy_forward.35} parent=0 // pred_fallthru
    _
  // Predicated region
  $region10: #{trippy_forward.35} parent=0 // pred_check
    _
  $region11: #{trippy_forward.35} parent=0 // pred_check_branch
    %13 = sbr.rel (0) target = $region13
  $region12: #{trippy_forward.35} parent=0 // pred_region
    _
  $region13: #{trippy_forward.35} parent=0 // pred_fallthru
    _
  %v15 = vld [vmem:[%s0] sm:$0xf]
  %v16 = vld [vmem:[%s0 + $0x4] sm:$0xf]
  %v17 = vld [vmem:[%s1] sm:$0xf]
  %v18 = vld [vmem:[%s1 + $0x4] sm:$0xf]
  %v19 = vld [vmem:[%s1 + $0x8] sm:$0xf]
  %v20 = vld [vmem:[%s1 + $0xc] sm:$0xf]
  %v21 = vld [vmem:[%s2] sm:$0x1]
  %v23 = vperm.slane %v21, 0
  %v27 = vunpack.c.l.b16 %v15
  %v28 = vunpack.c.l.b16 %v16
  %v29 = vpack.c.b16 %v28, %v27
  %v34 = vunpack.c.l.b16 %v17
  %v35 = vunpack.c.l.b16 %v18
  %v36 = vunpack.c.l.b16 %v19
  %v37 = vunpack.c.l.b16 %v20
  %v38 = vpack.c.b16 %v35, %v34
  %v39 = vpack.c.b16 %v37, %v36
  %vm42 = vcmask 261120
  %v44 = vsel %vm42, %v29, 0
  %46 = vmatpush.bf16.msra.mxu0 0
  %47 = vmatpush.bf16.msra.mxu0 0
  %48 = vmatpush.bf16.msra.mxu0 0
  %49 = vmatpush.bf16.msra.mxu0 0
  %50 = vmatpush.bf16.msra.mxu0 0
  %51 = vmatpush.bf16.msra.mxu0 0
  %52 = vmatpush.bf16.msra.mxu0 %v39
  %53 = vmatpush.bf16.msra.mxu0 %v38
  %54 = vmatmul.bf16.gmra.mxu0 %v44
  %v55 = vpop.f32.mrf.mxu0
  %v56 = vadd.f32 %v23, %v55
  %v57 = vpop.f32.mrf.mxu0
  %v58 = vadd.f32 %v23, %v57
  %59 = vdwg.mxu0
  %60 = vst [vmem:[%s3] sm:$0xff] %v56
  %61 = vst [vmem:[%s3 + $0x8] sm:$0xff] %v58
  // Predicated region
  $region14: #{trippy_forward.35} parent=0 // pred_check
    _
  $region15: #{trippy_forward.35} parent=0 // pred_check_branch
    %63 = sbr.rel (0) target = $region17
  $region16: #{trippy_forward.35} parent=0 // pred_region
    _
  $region17: #{trippy_forward.35} parent=0 // pred_fallthru
    _
  // Predicated region
  $region18: #{trippy_forward.35} parent=0 // pred_check
    _
  $region19: #{trippy_forward.35} parent=0 // pred_check_branch
    %65 = sbr.rel (0) target = $region21
  $region20: #{trippy_forward.35} parent=0 // pred_region
    _
  $region21: #{trippy_forward.35} parent=0 // pred_fallthru
    _

</llo_original>
